<compile_context>
chip_gen: v5e
topology: v5e:2x2
jax: 0.10.0
libtpu: 0.0.40
codegen_flags: <defaults>
</compile_context>

<pallas_src>
import math

import jax
import jax.numpy as jnp
from jax import lax
from jax.experimental import pallas as pl
from jax.experimental.pallas import tpu as pltpu

F32 = jnp.float32
NEG_SLOPE = 0.01  # nn.LeakyReLU default negative_slope


class BaselineCRFPallas:
    def __init__(self, key, *, in_channels=8, spatial=4, rep_size=32,
                 n_verbs=6, max_roles=3, splits=(4, 8),
                 roles_per_verb=(3, 2, 3, 1, 2, 3),
                 prediction_type="max_max"):
        self.splits = list(splits)
        self.n_verbs = n_verbs
        self.max_roles = max_roles
        self.prediction_type = prediction_type
        self.feat_dim = in_channels * spatial * spatial
        self.rep_size = rep_size

        # ---- synthetic deterministic "encoding": verb-role -> (group, pos, #nouns)
        vr_of_verb, noun_counts = [], []
        vr = 0
        for v in range(n_verbs):
            ids = []
            for _ in range(roles_per_verb[v]):
                ids.append(vr)
                noun_counts.append(2 + (vr % 7))  # noun counts in [2, 8]
                vr += 1
            vr_of_verb.append(ids)
        n_total_vr = vr

        group_of, pos_of = [], {}
        members = [[] for _ in self.splits]
        for vid in range(n_total_vr):
            g = 0
            for s in self.splits:
                if noun_counts[vid] <= s:
                    break
                g += 1
            group_of.append(g)
            pos_of[vid] = len(members[g])
            members[g].append(vid)
        self.n_vr_per_group = [len(m) for m in members]

        offs = [0]
        for i in range(1, len(self.splits)):
            offs.append(offs[-1] + self.n_vr_per_group[i - 1])

        # v_vr: static (verb, role-slot) -> 1-based local vr index (0 = padding)
        v_vr = [0] * (n_verbs * max_roles)
        for v in range(n_verbs):
            for k, vid in enumerate(sorted(vr_of_verb[v])):
                v_vr[v * max_roles + k] = offs[group_of[vid]] + pos_of[vid] + 1
        self.v_vr_list = v_vr  # kept as python ints: baked into the kernel

        # ---- parameters (deterministic; initLinear(val=None) is a no-op in torch,
        # so default Linear-style uniform init is used here)
        keys = jax.random.split(key, 4 + 2 * len(self.splits))

        def uinit(k, shape, fan_in):
            s = 1.0 / math.sqrt(fan_in)
            return jax.random.uniform(k, shape, F32, -s, s)

        self.w_cnn = uinit(keys[0], (self.feat_dim, rep_size), self.feat_dim)
        self.b_cnn = uinit(keys[1], (1, rep_size), self.feat_dim)
        w_v = uinit(keys[2], (rep_size, n_verbs), rep_size)
        b_v = uinit(keys[3], (1, n_verbs), rep_size)

        w_vrn, b_vrn = [], []
        for g, s in enumerate(self.splits):
            dout = s * self.n_vr_per_group[g]
            w = uinit(keys[4 + 2 * g], (rep_size, dout), rep_size)
            b = uinit(keys[5 + 2 * g], (1, dout), rep_size)
            # mask_args(): bias entries past each role's real noun count -> -inf
            # (safe: every role here has >= 2 unmasked nouns, so lse stays finite)
            mask_list = [False] * dout
            for pos, vid in enumerate(members[g]):
                for kk in range(noun_counts[vid], s):
                    mask_list[s * pos + kk] = True
            mask = jnp.array(mask_list, dtype=bool).reshape(1, dout)
            b = jnp.where(mask, -jnp.inf, b)
            w_vrn.append(w)
            b_vrn.append(b)

        # ---- concatenated, 128-padded weight for the single fused matmul
        # columns: [verbs | split0 vrn | split1 vrn | zero pad]
        self.total_vrn = sum(self.splits[g] * self.n_vr_per_group[g]
                             for g in range(len(self.splits)))
        self.CAT_COLS = n_verbs + self.total_vrn
        self.CAT_PAD = -(-self.CAT_COLS // 128) * 128
        w_parts = [w_v] + w_vrn
        b_parts = [b_v] + b_vrn
        if self.CAT_PAD > self.CAT_COLS:
            w_parts.append(jnp.zeros((rep_size, self.CAT_PAD - self.CAT_COLS), F32))
            b_parts.append(jnp.zeros((1, self.CAT_PAD - self.CAT_COLS), F32))
        self.w_cat = jnp.concatenate(w_parts, axis=1)
        self.b_cat = jnp.concatenate(b_parts, axis=1)

        # ---- packed output-slab layout (float slab + int slab)
        self.REP_OFF = 0
        self.VPOT_OFF = rep_size
        self.POT_OFF = rep_size + n_verbs
        self.SC_OFF = self.POT_OFF + self.total_vrn
        self.NORM_OFF = self.SC_OFF + n_verbs
        self.F_COLS = self.NORM_OFF + 1
        self.F_PAD = -(-self.F_COLS // 128) * 128       # lane-dense slab width
        self.I_COLS = n_verbs * max_roles
        self.I_PAD = -(-self.I_COLS // 128) * 128

    # ------------------------------------------------------------------ kernel
    def _build_kernel(self, tile_b):
        n_verbs = self.n_verbs
        max_roles = self.max_roles
        rep_size = self.rep_size
        splits = self.splits
        n_vr_per_group = self.n_vr_per_group
        v_vr = self.v_vr_list
        REP_OFF, VPOT_OFF, POT_OFF = self.REP_OFF, self.VPOT_OFF, self.POT_OFF
        SC_OFF, NORM_OFF = self.SC_OFF, self.NORM_OFF
        if self.prediction_type == "max_max":
            use_max = True
        elif self.prediction_type == "max_marginal":
            use_max = False
        else:
            raise ValueError("unknown inference type")

        def kernel(x_ref, w_cnn_ref, b_cnn_ref, w_cat_ref, b_cat_ref,
                   f_ref, i_ref):
            # deterministic padding lanes in the output slabs
            f_ref[...] = jnp.zeros_like(f_ref)
            i_ref[...] = jnp.zeros_like(i_ref)

            # ---- CNN head: rep = LeakyReLU(x @ W + b); Dropout is identity.
            y = jnp.dot(x_ref[...], w_cnn_ref[...],
                        preferred_element_type=jnp.float32) + b_cnn_ref[...]
            rep = jnp.where(y >= 0.0, y, NEG_SLOPE * y)
            f_ref[:, REP_OFF:REP_OFF + rep_size] = rep

            # ---- one padded N=128 matmul for linear_v + every linear_vrn split
            z = jnp.dot(rep, w_cat_ref[...],
                        preferred_element_type=jnp.float32) + b_cat_ref[...]

            # ---- verb potential = log_softmax(linear_v(rep), dim=1)
            yv = z[:, 0:n_verbs]
            mv = jnp.max(yv, axis=1, keepdims=True)
            lse_v = mv + jnp.log(jnp.sum(jnp.exp(yv - mv), axis=1, keepdims=True))
            v_pot = yv - lse_v
            f_ref[:, VPOT_OFF:VPOT_OFF + n_verbs] = v_pot

            # ---- per verb-role stats, statically unrolled (rows stay in vregs)
            role_max, role_maxi, role_marg = [], [], []
            zcol = n_verbs
            pcol = POT_OFF
            for g, s in enumerate(splits):
                for r in range(n_vr_per_group[g]):
                    seg = z[:, zcol + r * s: zcol + (r + 1) * s]
                    m = jnp.max(seg, axis=1, keepdims=True)
                    lse = m + jnp.log(jnp.sum(jnp.exp(seg - m), axis=1,
                                              keepdims=True))
                    pot = seg - lse                      # log_softmax over nouns
                    f_ref[:, pcol + r * s: pcol + (r + 1) * s] = pot
                    pm = jnp.max(pot, axis=1, keepdims=True)
                    iota = lax.broadcasted_iota(jnp.int32, pot.shape, 1)
                    maxi = jnp.min(jnp.where(pot == pm, iota, s),
                                   axis=1, keepdims=True)  # first-occurrence argmax
                    marg = pm + jnp.log(jnp.sum(jnp.exp(pot - pm), axis=1,
                                                keepdims=True))
                    role_max.append(pm)
                    role_maxi.append(maxi)
                    role_marg.append(marg)
                zcol += s * n_vr_per_group[g]
                pcol += s * n_vr_per_group[g]

            # ---- static v_vr gather + verb-level combine (index 0 = padding role)
            v_marg_cols, v_max_cols = [], []
            for v in range(n_verbs):
                ms = jnp.zeros((tile_b, 1), jnp.float32)
                xs = jnp.zeros((tile_b, 1), jnp.float32)
                for k in range(max_roles):
                    idx = v_vr[v * max_roles + k]
                    if idx != 0:
                        ms = ms + role_marg[idx - 1]
                        xs = xs + role_max[idx - 1]
                        c = v * max_roles + k
                        # TODO(synk): torch returns int64 argmax indices; int32 here.
                        i_ref[:, c:c + 1] = role_maxi[idx - 1]
                vp = v_pot[:, v:v + 1]
                v_marg_cols.append(ms + vp)   # v_marginal column for verb v
                v_max_cols.append(xs + vp)    # v_max column for verb v

            # ---- norm = logsumexp over verbs of v_marginal
            mrun = v_marg_cols[0]
            for col in v_marg_cols[1:]:
                mrun = jnp.maximum(mrun, col)
            ssum = jnp.zeros((tile_b, 1), jnp.float32)
            for col in v_marg_cols:
                ssum = ssum + jnp.exp(col - mrun)
            norm = mrun + jnp.log(ssum)
            f_ref[:, NORM_OFF:NORM_OFF + 1] = norm

            score_cols = v_max_cols if use_max else v_marg_cols
            for v in range(n_verbs):
                f_ref[:, SC_OFF + v:SC_OFF + v + 1] = score_cols[v]

        return kernel

    # ----------------------------------------------------------------- forward
    def forward(self, feats_nchw):
        # TODO(synk): the torchvision resnet101 backbone (conv1..layer4,
        # pretrained) is not re-implemented; the kernel consumes the
        # post-backbone NCHW feature map directly.
        x = feats_nchw.astype(F32)
        B = x.shape[0]
        x_flat = x.reshape(B, -1)  # row-major over (C, H, W), as in torch .view

        # batch tiling (one grid step at small B; shards across v7x's 2 TCs at
        # large B).  Tiny VMEM footprint (<1 MiB) fits every generation.
        TILE_B = B if B <= 256 else 256
        pad_b = (-B) % TILE_B
        if pad_b:
            x_flat = jnp.concatenate(
                [x_flat, jnp.zeros((pad_b, self.feat_dim), F32)], axis=0)
        Bp = B + pad_b
        grid = (Bp // TILE_B,)

        kernel = self._build_kernel(TILE_B)

        f_out, i_out = pl.pallas_call(
            kernel,
            out_shape=(jax.ShapeDtypeStruct((Bp, self.F_PAD), F32),
                       jax.ShapeDtypeStruct((Bp, self.I_PAD), jnp.int32)),
            grid=grid,
            in_specs=[
                pl.BlockSpec((TILE_B, self.feat_dim), lambda i: (i, 0)),
                pl.BlockSpec((self.feat_dim, self.rep_size), lambda i: (0, 0)),
                pl.BlockSpec((1, self.rep_size), lambda i: (0, 0)),
                pl.BlockSpec((self.rep_size, self.CAT_PAD), lambda i: (0, 0)),
                pl.BlockSpec((1, self.CAT_PAD), lambda i: (0, 0)),
            ],
            out_specs=(pl.BlockSpec((TILE_B, self.F_PAD), lambda i: (i, 0)),
                       pl.BlockSpec((TILE_B, self.I_PAD), lambda i: (i, 0))),
            compiler_params=pltpu.CompilerParams(
                dimension_semantics=("parallel",)),
        )(x_flat, self.w_cnn, self.b_cnn, self.w_cat, self.b_cat)

        # ---- host-side unpacking of the packed slabs (cheap slices/reshapes)
        rep = f_out[:B, self.REP_OFF:self.REP_OFF + self.rep_size]
        v_potential = f_out[:B, self.VPOT_OFF:self.VPOT_OFF + self.n_verbs]
        vrn_potential = []
        off = self.POT_OFF
        for g, s in enumerate(self.splits):
            n_vr = self.n_vr_per_group[g]
            vrn_potential.append(
                f_out[:B, off:off + s * n_vr].reshape(B, n_vr, s))
            off += s * n_vr
        scores = f_out[:B, self.SC_OFF:self.SC_OFF + self.n_verbs]
        norm = f_out[:B, self.NORM_OFF]
        vr_maxi_grouped = i_out[:B, :self.I_COLS].reshape(
            B, self.n_verbs, self.max_roles)

        return rep, v_potential, vrn_potential, norm, scores, vr_maxi_grouped


if __name__ == "__main__":
    key = jax.random.PRNGKey(0)
    kp, kx = jax.random.split(key)
    model = BaselineCRFPallas(kp)
    # NCHW post-backbone feature map, small shapes: B=2, C=8, H=W=4
    x = jax.random.normal(kx, (2, 8, 4, 4), dtype=F32)
    fwd = jax.jit(model.forward)
    out = fwd(x)
    jax.block_until_ready(out)
    print("KERNEL_OK")
</pallas_src>

<mosaic_0001>
module attributes {stable_mosaic.version = 11 : i64} {
  func.func @kernel(%arg0: i32, %arg1: memref<2x128xf32, #tpu.memory_space<vmem>>, %arg2: memref<128x32xf32, #tpu.memory_space<vmem>>, %arg3: memref<1x32xf32, #tpu.memory_space<vmem>>, %arg4: memref<32x128xf32, #tpu.memory_space<vmem>>, %arg5: memref<1x128xf32, #tpu.memory_space<vmem>>, %arg6: memref<2x256xf32, #tpu.memory_space<vmem>>, %arg7: memref<2x128xi32, #tpu.memory_space<vmem>>) attributes {dimension_semantics = [#tpu.dimension_semantics<parallel>], iteration_bounds = array<i64: 1>, scalar_prefetch = 0 : i64, scratch_operands = 0 : i64, tpu.core_type = #tpu.core_type<tc>, window_params = [{transform_indices = @transform_0, window_bounds = array<i64: 2, 128>}, {pipeline_mode = #tpu.pipeline_mode<synchronous>, transform_indices = @transform_1, window_bounds = array<i64: 128, 32>}, {pipeline_mode = #tpu.pipeline_mode<synchronous>, transform_indices = @transform_2, window_bounds = array<i64: 1, 32>}, {pipeline_mode = #tpu.pipeline_mode<synchronous>, transform_indices = @transform_3, window_bounds = array<i64: 32, 128>}, {pipeline_mode = #tpu.pipeline_mode<synchronous>, transform_indices = @transform_4, window_bounds = array<i64: 1, 128>}, {transform_indices = @transform_5, window_bounds = array<i64: 2, 256>}, {transform_indices = @transform_6, window_bounds = array<i64: 2, 128>}]} {
    %cst = arith.constant 0.000000e+00 : f32
    %0 = vector.broadcast %cst : f32 to vector<2x256xf32>
    %c0 = arith.constant 0 : index
    %c0_0 = arith.constant 0 : index
    %1 = vector.load %arg6[%c0, %c0_0] : memref<2x256xf32, #tpu.memory_space<vmem>>, vector<2x256xf32>
    tpu.vector_store %arg6[%c0, %c0_0], %0 {strides = array<i32>} : memref<2x256xf32, #tpu.memory_space<vmem>>, vector<2x256xf32>,
    %c0_i32 = arith.constant 0 : i32
    %2 = vector.broadcast %c0_i32 : i32 to vector<2x128xi32>
    %c0_1 = arith.constant 0 : index
    %c0_2 = arith.constant 0 : index
    %3 = vector.load %arg7[%c0_1, %c0_2] : memref<2x128xi32, #tpu.memory_space<vmem>>, vector<2x128xi32>
    tpu.vector_store %arg7[%c0_1, %c0_2], %2 {strides = array<i32>} : memref<2x128xi32, #tpu.memory_space<vmem>>, vector<2x128xi32>,
    %c0_3 = arith.constant 0 : index
    %c0_4 = arith.constant 0 : index
    %4 = vector.load %arg1[%c0_3, %c0_4] : memref<2x128xf32, #tpu.memory_space<vmem>>, vector<2x128xf32>
    %c0_5 = arith.constant 0 : index
    %c0_6 = arith.constant 0 : index
    %5 = vector.load %arg2[%c0_5, %c0_6] : memref<128x32xf32, #tpu.memory_space<vmem>>, vector<128x32xf32>
    %cst_7 = arith.constant dense<0.000000e+00> : vector<2x32xf32>
    %6 = tpu.matmul %4, %5, %cst_7 {dimension_numbers = #tpu.dot_dimension_numbers<[1], [0], [0], [1], [0, 0, 1, 1], [], []>} : vector<2x128xf32>, vector<128x32xf32>, vector<2x32xf32> -> vector<2x32xf32>
    %c0_8 = arith.constant 0 : index
    %c0_9 = arith.constant 0 : index
    %7 = vector.load %arg3[%c0_8, %c0_9] : memref<1x32xf32, #tpu.memory_space<vmem>>, vector<1x32xf32>
    %8 = vector.broadcast %7 : vector<1x32xf32> to vector<2x32xf32>
    %9 = arith.addf %6, %8 : vector<2x32xf32>
    %cst_10 = arith.constant 0.000000e+00 : f32
    %10 = vector.broadcast %cst_10 : f32 to vector<2x32xf32>
    %11 = arith.cmpf oge, %9, %10 : vector<2x32xf32>
    %cst_11 = arith.constant 0.00999999977 : f32
    %12 = vector.broadcast %cst_11 : f32 to vector<2x32xf32>
    %13 = arith.mulf %12, %9 : vector<2x32xf32>
    %14 = arith.select %11, %9, %13 : vector<2x32xi1>, vector<2x32xf32>
    %c0_12 = arith.constant 0 : index
    %c0_13 = arith.constant 0 : index
    %15 = vector.load %arg6[%c0_12, %c0_13] : memref<2x256xf32, #tpu.memory_space<vmem>>, vector<2x32xf32>
    tpu.vector_store %arg6[%c0_12, %c0_13], %14 {strides = array<i32>} : memref<2x256xf32, #tpu.memory_space<vmem>>, vector<2x32xf32>,
    %c0_14 = arith.constant 0 : index
    %c0_15 = arith.constant 0 : index
    %16 = vector.load %arg4[%c0_14, %c0_15] : memref<32x128xf32, #tpu.memory_space<vmem>>, vector<32x128xf32>
    %cst_16 = arith.constant dense<0.000000e+00> : vector<2x128xf32>
    %17 = tpu.matmul %14, %16, %cst_16 {dimension_numbers = #tpu.dot_dimension_numbers<[1], [0], [0], [1], [0, 0, 1, 1], [], []>} : vector<2x32xf32>, vector<32x128xf32>, vector<2x128xf32> -> vector<2x128xf32>
    %c0_17 = arith.constant 0 : index
    %c0_18 = arith.constant 0 : index
    %18 = vector.load %arg5[%c0_17, %c0_18] : memref<1x128xf32, #tpu.memory_space<vmem>>, vector<1x128xf32>
    %19 = vector.broadcast %18 : vector<1x128xf32> to vector<2x128xf32>
    %20 = arith.addf %17, %19 : vector<2x128xf32>
    %21 = vector.extract_strided_slice %20 {offsets = [0, 0], sizes = [2, 6], strides = [1, 1]} : vector<2x128xf32> to vector<2x6xf32>
    %cst_19 = arith.constant dense<0xFF800000> : vector<2xf32>
    %22 = vector.multi_reduction <maximumf>, %21, %cst_19 [1] : vector<2x6xf32> to vector<2xf32>
    %23 = vector.shape_cast %22 : vector<2xf32> to vector<2x1xf32>
    %24 = vector.broadcast %23 : vector<2x1xf32> to vector<2x6xf32>
    %25 = arith.subf %21, %24 : vector<2x6xf32>
    %26 = math.exp %25 : vector<2x6xf32>
    %cst_20 = arith.constant dense<0.000000e+00> : vector<2xf32>
    %27 = vector.multi_reduction <add>, %26, %cst_20 [1] : vector<2x6xf32> to vector<2xf32>
    %28 = vector.shape_cast %27 : vector<2xf32> to vector<2x1xf32>
    %29 = math.log %28 : vector<2x1xf32>
    %30 = arith.addf %23, %29 : vector<2x1xf32>
    %31 = vector.broadcast %30 : vector<2x1xf32> to vector<2x6xf32>
    %32 = arith.subf %21, %31 : vector<2x6xf32>
    %c0_21 = arith.constant 0 : index
    %c32 = arith.constant 32 : index
    %33 = vector.load %arg6[%c0_21, %c32] : memref<2x256xf32, #tpu.memory_space<vmem>>, vector<2x6xf32>
    tpu.vector_store %arg6[%c0_21, %c32], %32 {strides = array<i32>} : memref<2x256xf32, #tpu.memory_space<vmem>>, vector<2x6xf32>,
    %34 = vector.extract_strided_slice %20 {offsets = [0, 6], sizes = [2, 4], strides = [1, 1]} : vector<2x128xf32> to vector<2x4xf32>
    %cst_22 = arith.constant dense<0xFF800000> : vector<2xf32>
    %35 = vector.multi_reduction <maximumf>, %34, %cst_22 [1] : vector<2x4xf32> to vector<2xf32>
    %36 = vector.shape_cast %35 : vector<2xf32> to vector<2x1xf32>
    %37 = vector.broadcast %36 : vector<2x1xf32> to vector<2x4xf32>
    %38 = arith.subf %34, %37 : vector<2x4xf32>
    %39 = math.exp %38 : vector<2x4xf32>
    %cst_23 = arith.constant dense<0.000000e+00> : vector<2xf32>
    %40 = vector.multi_reduction <add>, %39, %cst_23 [1] : vector<2x4xf32> to vector<2xf32>
    %41 = vector.shape_cast %40 : vector<2xf32> to vector<2x1xf32>
    %42 = math.log %41 : vector<2x1xf32>
    %43 = arith.addf %36, %42 : vector<2x1xf32>
    %44 = vector.broadcast %43 : vector<2x1xf32> to vector<2x4xf32>
    %45 = arith.subf %34, %44 : vector<2x4xf32>
    %c0_24 = arith.constant 0 : index
    %c38 = arith.constant 38 : index
    %46 = vector.load %arg6[%c0_24, %c38] : memref<2x256xf32, #tpu.memory_space<vmem>>, vector<2x4xf32>
    tpu.vector_store %arg6[%c0_24, %c38], %45 {strides = array<i32>} : memref<2x256xf32, #tpu.memory_space<vmem>>, vector<2x4xf32>,
    %cst_25 = arith.constant dense<0xFF800000> : vector<2xf32>
    %47 = vector.multi_reduction <maximumf>, %45, %cst_25 [1] : vector<2x4xf32> to vector<2xf32>
    %48 = vector.shape_cast %47 : vector<2xf32> to vector<2x1xf32>
    %49 = tpu.iota {dimensions = array<i32: 1>} : vector<2x4xi32>
    %50 = vector.broadcast %48 : vector<2x1xf32> to vector<2x4xf32>
    %51 = arith.cmpf oeq, %45, %50 : vector<2x4xf32>
    %c4_i32 = arith.constant 4 : i32
    %52 = vector.broadcast %c4_i32 : i32 to vector<2x4xi32>
    %53 = arith.select %51, %49, %52 : vector<2x4xi1>, vector<2x4xi32>
    %cst_26 = arith.constant dense<2147483647> : vector<2xi32>
    %54 = vector.multi_reduction <minsi>, %53, %cst_26 [1] : vector<2x4xi32> to vector<2xi32>
    %55 = vector.shape_cast %54 : vector<2xi32> to vector<2x1xi32>
    %56 = vector.broadcast %48 : vector<2x1xf32> to vector<2x4xf32>
    %57 = arith.subf %45, %56 : vector<2x4xf32>
    %58 = math.exp %57 : vector<2x4xf32>
    %cst_27 = arith.constant dense<0.000000e+00> : vector<2xf32>
    %59 = vector.multi_reduction <add>, %58, %cst_27 [1] : vector<2x4xf32> to vector<2xf32>
    %60 = vector.shape_cast %59 : vector<2xf32> to vector<2x1xf32>
    %61 = math.log %60 : vector<2x1xf32>
    %62 = arith.addf %48, %61 : vector<2x1xf32>
    %63 = vector.extract_strided_slice %20 {offsets = [0, 10], sizes = [2, 4], strides = [1, 1]} : vector<2x128xf32> to vector<2x4xf32>
    %cst_28 = arith.constant dense<0xFF800000> : vector<2xf32>
    %64 = vector.multi_reduction <maximumf>, %63, %cst_28 [1] : vector<2x4xf32> to vector<2xf32>
    %65 = vector.shape_cast %64 : vector<2xf32> to vector<2x1xf32>
    %66 = vector.broadcast %65 : vector<2x1xf32> to vector<2x4xf32>
    %67 = arith.subf %63, %66 : vector<2x4xf32>
    %68 = math.exp %67 : vector<2x4xf32>
    %cst_29 = arith.constant dense<0.000000e+00> : vector<2xf32>
    %69 = vector.multi_reduction <add>, %68, %cst_29 [1] : vector<2x4xf32> to vector<2xf32>
    %70 = vector.shape_cast %69 : vector<2xf32> to vector<2x1xf32>
    %71 = math.log %70 : vector<2x1xf32>
    %72 = arith.addf %65, %71 : vector<2x1xf32>
    %73 = vector.broadcast %72 : vector<2x1xf32> to vector<2x4xf32>
    %74 = arith.subf %63, %73 : vector<2x4xf32>
    %c0_30 = arith.constant 0 : index
    %c42 = arith.constant 42 : index
    %75 = vector.load %arg6[%c0_30, %c42] : memref<2x256xf32, #tpu.memory_space<vmem>>, vector<2x4xf32>
    tpu.vector_store %arg6[%c0_30, %c42], %74 {strides = array<i32>} : memref<2x256xf32, #tpu.memory_space<vmem>>, vector<2x4xf32>,
    %cst_31 = arith.constant dense<0xFF800000> : vector<2xf32>
    %76 = vector.multi_reduction <maximumf>, %74, %cst_31 [1] : vector<2x4xf32> to vector<2xf32>
    %77 = vector.shape_cast %76 : vector<2xf32> to vector<2x1xf32>
    %78 = tpu.iota {dimensions = array<i32: 1>} : vector<2x4xi32>
    %79 = vector.broadcast %77 : vector<2x1xf32> to vector<2x4xf32>
    %80 = arith.cmpf oeq, %74, %79 : vector<2x4xf32>
    %c4_i32_32 = arith.constant 4 : i32
    %81 = vector.broadcast %c4_i32_32 : i32 to vector<2x4xi32>
    %82 = arith.select %80, %78, %81 : vector<2x4xi1>, vector<2x4xi32>
    %cst_33 = arith.constant dense<2147483647> : vector<2xi32>
    %83 = vector.multi_reduction <minsi>, %82, %cst_33 [1] : vector<2x4xi32> to vector<2xi32>
    %84 = vector.shape_cast %83 : vector<2xi32> to vector<2x1xi32>
    %85 = vector.broadcast %77 : vector<2x1xf32> to vector<2x4xf32>
    %86 = arith.subf %74, %85 : vector<2x4xf32>
    %87 = math.exp %86 : vector<2x4xf32>
    %cst_34 = arith.constant dense<0.000000e+00> : vector<2xf32>
    %88 = vector.multi_reduction <add>, %87, %cst_34 [1] : vector<2x4xf32> to vector<2xf32>
    %89 = vector.shape_cast %88 : vector<2xf32> to vector<2x1xf32>
    %90 = math.log %89 : vector<2x1xf32>
    %91 = arith.addf %77, %90 : vector<2x1xf32>
    %92 = vector.extract_strided_slice %20 {offsets = [0, 14], sizes = [2, 4], strides = [1, 1]} : vector<2x128xf32> to vector<2x4xf32>
    %cst_35 = arith.constant dense<0xFF800000> : vector<2xf32>
    %93 = vector.multi_reduction <maximumf>, %92, %cst_35 [1] : vector<2x4xf32> to vector<2xf32>
    %94 = vector.shape_cast %93 : vector<2xf32> to vector<2x1xf32>
    %95 = vector.broadcast %94 : vector<2x1xf32> to vector<2x4xf32>
    %96 = arith.subf %92, %95 : vector<2x4xf32>
    %97 = math.exp %96 : vector<2x4xf32>
    %cst_36 = arith.constant dense<0.000000e+00> : vector<2xf32>
    %98 = vector.multi_reduction <add>, %97, %cst_36 [1] : vector<2x4xf32> to vector<2xf32>
    %99 = vector.shape_cast %98 : vector<2xf32> to vector<2x1xf32>
    %100 = math.log %99 : vector<2x1xf32>
    %101 = arith.addf %94, %100 : vector<2x1xf32>
    %102 = vector.broadcast %101 : vector<2x1xf32> to vector<2x4xf32>
    %103 = arith.subf %92, %102 : vector<2x4xf32>
    %c0_37 = arith.constant 0 : index
    %c46 = arith.constant 46 : index
    %104 = vector.load %arg6[%c0_37, %c46] : memref<2x256xf32, #tpu.memory_space<vmem>>, vector<2x4xf32>
    tpu.vector_store %arg6[%c0_37, %c46], %103 {strides = array<i32>} : memref<2x256xf32, #tpu.memory_space<vmem>>, vector<2x4xf32>,
    %cst_38 = arith.constant dense<0xFF800000> : vector<2xf32>
    %105 = vector.multi_reduction <maximumf>, %103, %cst_38 [1] : vector<2x4xf32> to vector<2xf32>
    %106 = vector.shape_cast %105 : vector<2xf32> to vector<2x1xf32>
    %107 = tpu.iota {dimensions = array<i32: 1>} : vector<2x4xi32>
    %108 = vector.broadcast %106 : vector<2x1xf32> to vector<2x4xf32>
    %109 = arith.cmpf oeq, %103, %108 : vector<2x4xf32>
    %c4_i32_39 = arith.constant 4 : i32
    %110 = vector.broadcast %c4_i32_39 : i32 to vector<2x4xi32>
    %111 = arith.select %109, %107, %110 : vector<2x4xi1>, vector<2x4xi32>
    %cst_40 = arith.constant dense<2147483647> : vector<2xi32>
    %112 = vector.multi_reduction <minsi>, %111, %cst_40 [1] : vector<2x4xi32> to vector<2xi32>
    %113 = vector.shape_cast %112 : vector<2xi32> to vector<2x1xi32>
    %114 = vector.broadcast %106 : vector<2x1xf32> to vector<2x4xf32>
    %115 = arith.subf %103, %114 : vector<2x4xf32>
    %116 = math.exp %115 : vector<2x4xf32>
    %cst_41 = arith.constant dense<0.000000e+00> : vector<2xf32>
    %117 = vector.multi_reduction <add>, %116, %cst_41 [1] : vector<2x4xf32> to vector<2xf32>
    %118 = vector.shape_cast %117 : vector<2xf32> to vector<2x1xf32>
    %119 = math.log %118 : vector<2x1xf32>
    %120 = arith.addf %106, %119 : vector<2x1xf32>
    %121 = vector.extract_strided_slice %20 {offsets = [0, 18], sizes = [2, 4], strides = [1, 1]} : vector<2x128xf32> to vector<2x4xf32>
    %cst_42 = arith.constant dense<0xFF800000> : vector<2xf32>
    %122 = vector.multi_reduction <maximumf>, %121, %cst_42 [1] : vector<2x4xf32> to vector<2xf32>
    %123 = vector.shape_cast %122 : vector<2xf32> to vector<2x1xf32>
    %124 = vector.broadcast %123 : vector<2x1xf32> to vector<2x4xf32>
    %125 = arith.subf %121, %124 : vector<2x4xf32>
    %126 = math.exp %125 : vector<2x4xf32>
    %cst_43 = arith.constant dense<0.000000e+00> : vector<2xf32>
    %127 = vector.multi_reduction <add>, %126, %cst_43 [1] : vector<2x4xf32> to vector<2xf32>
    %128 = vector.shape_cast %127 : vector<2xf32> to vector<2x1xf32>
    %129 = math.log %128 : vector<2x1xf32>
    %130 = arith.addf %123, %129 : vector<2x1xf32>
    %131 = vector.broadcast %130 : vector<2x1xf32> to vector<2x4xf32>
    %132 = arith.subf %121, %131 : vector<2x4xf32>
    %c0_44 = arith.constant 0 : index
    %c50 = arith.constant 50 : index
    %133 = vector.load %arg6[%c0_44, %c50] : memref<2x256xf32, #tpu.memory_space<vmem>>, vector<2x4xf32>
    tpu.vector_store %arg6[%c0_44, %c50], %132 {strides = array<i32>} : memref<2x256xf32, #tpu.memory_space<vmem>>, vector<2x4xf32>,
    %cst_45 = arith.constant dense<0xFF800000> : vector<2xf32>
    %134 = vector.multi_reduction <maximumf>, %132, %cst_45 [1] : vector<2x4xf32> to vector<2xf32>
    %135 = vector.shape_cast %134 : vector<2xf32> to vector<2x1xf32>
    %136 = tpu.iota {dimensions = array<i32: 1>} : vector<2x4xi32>
    %137 = vector.broadcast %135 : vector<2x1xf32> to vector<2x4xf32>
    %138 = arith.cmpf oeq, %132, %137 : vector<2x4xf32>
    %c4_i32_46 = arith.constant 4 : i32
    %139 = vector.broadcast %c4_i32_46 : i32 to vector<2x4xi32>
    %140 = arith.select %138, %136, %139 : vector<2x4xi1>, vector<2x4xi32>
    %cst_47 = arith.constant dense<2147483647> : vector<2xi32>
    %141 = vector.multi_reduction <minsi>, %140, %cst_47 [1] : vector<2x4xi32> to vector<2xi32>
    %142 = vector.shape_cast %141 : vector<2xi32> to vector<2x1xi32>
    %143 = vector.broadcast %135 : vector<2x1xf32> to vector<2x4xf32>
    %144 = arith.subf %132, %143 : vector<2x4xf32>
    %145 = math.exp %144 : vector<2x4xf32>
    %cst_48 = arith.constant dense<0.000000e+00> : vector<2xf32>
    %146 = vector.multi_reduction <add>, %145, %cst_48 [1] : vector<2x4xf32> to vector<2xf32>
    %147 = vector.shape_cast %146 : vector<2xf32> to vector<2x1xf32>
    %148 = math.log %147 : vector<2x1xf32>
    %149 = arith.addf %135, %148 : vector<2x1xf32>
    %150 = vector.extract_strided_slice %20 {offsets = [0, 22], sizes = [2, 4], strides = [1, 1]} : vector<2x128xf32> to vector<2x4xf32>
    %cst_49 = arith.constant dense<0xFF800000> : vector<2xf32>
    %151 = vector.multi_reduction <maximumf>, %150, %cst_49 [1] : vector<2x4xf32> to vector<2xf32>
    %152 = vector.shape_cast %151 : vector<2xf32> to vector<2x1xf32>
    %153 = vector.broadcast %152 : vector<2x1xf32> to vector<2x4xf32>
    %154 = arith.subf %150, %153 : vector<2x4xf32>
    %155 = math.exp %154 : vector<2x4xf32>
    %cst_50 = arith.constant dense<0.000000e+00> : vector<2xf32>
    %156 = vector.multi_reduction <add>, %155, %cst_50 [1] : vector<2x4xf32> to vector<2xf32>
    %157 = vector.shape_cast %156 : vector<2xf32> to vector<2x1xf32>
    %158 = math.log %157 : vector<2x1xf32>
    %159 = arith.addf %152, %158 : vector<2x1xf32>
    %160 = vector.broadcast %159 : vector<2x1xf32> to vector<2x4xf32>
    %161 = arith.subf %150, %160 : vector<2x4xf32>
    %c0_51 = arith.constant 0 : index
    %c54 = arith.constant 54 : index
    %162 = vector.load %arg6[%c0_51, %c54] : memref<2x256xf32, #tpu.memory_space<vmem>>, vector<2x4xf32>
    tpu.vector_store %arg6[%c0_51, %c54], %161 {strides = array<i32>} : memref<2x256xf32, #tpu.memory_space<vmem>>, vector<2x4xf32>,
    %cst_52 = arith.constant dense<0xFF800000> : vector<2xf32>
    %163 = vector.multi_reduction <maximumf>, %161, %cst_52 [1] : vector<2x4xf32> to vector<2xf32>
    %164 = vector.shape_cast %163 : vector<2xf32> to vector<2x1xf32>
    %165 = tpu.iota {dimensions = array<i32: 1>} : vector<2x4xi32>
    %166 = vector.broadcast %164 : vector<2x1xf32> to vector<2x4xf32>
    %167 = arith.cmpf oeq, %161, %166 : vector<2x4xf32>
    %c4_i32_53 = arith.constant 4 : i32
    %168 = vector.broadcast %c4_i32_53 : i32 to vector<2x4xi32>
    %169 = arith.select %167, %165, %168 : vector<2x4xi1>, vector<2x4xi32>
    %cst_54 = arith.constant dense<2147483647> : vector<2xi32>
    %170 = vector.multi_reduction <minsi>, %169, %cst_54 [1] : vector<2x4xi32> to vector<2xi32>
    %171 = vector.shape_cast %170 : vector<2xi32> to vector<2x1xi32>
    %172 = vector.broadcast %164 : vector<2x1xf32> to vector<2x4xf32>
    %173 = arith.subf %161, %172 : vector<2x4xf32>
    %174 = math.exp %173 : vector<2x4xf32>
    %cst_55 = arith.constant dense<0.000000e+00> : vector<2xf32>
    %175 = vector.multi_reduction <add>, %174, %cst_55 [1] : vector<2x4xf32> to vector<2xf32>
    %176 = vector.shape_cast %175 : vector<2xf32> to vector<2x1xf32>
    %177 = math.log %176 : vector<2x1xf32>
    %178 = arith.addf %164, %177 : vector<2x1xf32>
    %179 = vector.extract_strided_slice %20 {offsets = [0, 26], sizes = [2, 4], strides = [1, 1]} : vector<2x128xf32> to vector<2x4xf32>
    %cst_56 = arith.constant dense<0xFF800000> : vector<2xf32>
    %180 = vector.multi_reduction <maximumf>, %179, %cst_56 [1] : vector<2x4xf32> to vector<2xf32>
    %181 = vector.shape_cast %180 : vector<2xf32> to vector<2x1xf32>
    %182 = vector.broadcast %181 : vector<2x1xf32> to vector<2x4xf32>
    %183 = arith.subf %179, %182 : vector<2x4xf32>
    %184 = math.exp %183 : vector<2x4xf32>
    %cst_57 = arith.constant dense<0.000000e+00> : vector<2xf32>
    %185 = vector.multi_reduction <add>, %184, %cst_57 [1] : vector<2x4xf32> to vector<2xf32>
    %186 = vector.shape_cast %185 : vector<2xf32> to vector<2x1xf32>
    %187 = math.log %186 : vector<2x1xf32>
    %188 = arith.addf %181, %187 : vector<2x1xf32>
    %189 = vector.broadcast %188 : vector<2x1xf32> to vector<2x4xf32>
    %190 = arith.subf %179, %189 : vector<2x4xf32>
    %c0_58 = arith.constant 0 : index
    %c58 = arith.constant 58 : index
    %191 = vector.load %arg6[%c0_58, %c58] : memref<2x256xf32, #tpu.memory_space<vmem>>, vector<2x4xf32>
    tpu.vector_store %arg6[%c0_58, %c58], %190 {strides = array<i32>} : memref<2x256xf32, #tpu.memory_space<vmem>>, vector<2x4xf32>,
    %cst_59 = arith.constant dense<0xFF800000> : vector<2xf32>
    %192 = vector.multi_reduction <maximumf>, %190, %cst_59 [1] : vector<2x4xf32> to vector<2xf32>
    %193 = vector.shape_cast %192 : vector<2xf32> to vector<2x1xf32>
    %194 = tpu.iota {dimensions = array<i32: 1>} : vector<2x4xi32>
    %195 = vector.broadcast %193 : vector<2x1xf32> to vector<2x4xf32>
    %196 = arith.cmpf oeq, %190, %195 : vector<2x4xf32>
    %c4_i32_60 = arith.constant 4 : i32
    %197 = vector.broadcast %c4_i32_60 : i32 to vector<2x4xi32>
    %198 = arith.select %196, %194, %197 : vector<2x4xi1>, vector<2x4xi32>
    %cst_61 = arith.constant dense<2147483647> : vector<2xi32>
    %199 = vector.multi_reduction <minsi>, %198, %cst_61 [1] : vector<2x4xi32> to vector<2xi32>
    %200 = vector.shape_cast %199 : vector<2xi32> to vector<2x1xi32>
    %201 = vector.broadcast %193 : vector<2x1xf32> to vector<2x4xf32>
    %202 = arith.subf %190, %201 : vector<2x4xf32>
    %203 = math.exp %202 : vector<2x4xf32>
    %cst_62 = arith.constant dense<0.000000e+00> : vector<2xf32>
    %204 = vector.multi_reduction <add>, %203, %cst_62 [1] : vector<2x4xf32> to vector<2xf32>
    %205 = vector.shape_cast %204 : vector<2xf32> to vector<2x1xf32>
    %206 = math.log %205 : vector<2x1xf32>
    %207 = arith.addf %193, %206 : vector<2x1xf32>
    %208 = vector.extract_strided_slice %20 {offsets = [0, 30], sizes = [2, 8], strides = [1, 1]} : vector<2x128xf32> to vector<2x8xf32>
    %cst_63 = arith.constant dense<0xFF800000> : vector<2xf32>
    %209 = vector.multi_reduction <maximumf>, %208, %cst_63 [1] : vector<2x8xf32> to vector<2xf32>
    %210 = vector.shape_cast %209 : vector<2xf32> to vector<2x1xf32>
    %211 = vector.broadcast %210 : vector<2x1xf32> to vector<2x8xf32>
    %212 = arith.subf %208, %211 : vector<2x8xf32>
    %213 = math.exp %212 : vector<2x8xf32>
    %cst_64 = arith.constant dense<0.000000e+00> : vector<2xf32>
    %214 = vector.multi_reduction <add>, %213, %cst_64 [1] : vector<2x8xf32> to vector<2xf32>
    %215 = vector.shape_cast %214 : vector<2xf32> to vector<2x1xf32>
    %216 = math.log %215 : vector<2x1xf32>
    %217 = arith.addf %210, %216 : vector<2x1xf32>
    %218 = vector.broadcast %217 : vector<2x1xf32> to vector<2x8xf32>
    %219 = arith.subf %208, %218 : vector<2x8xf32>
    %c0_65 = arith.constant 0 : index
    %c62 = arith.constant 62 : index
    %220 = vector.load %arg6[%c0_65, %c62] : memref<2x256xf32, #tpu.memory_space<vmem>>, vector<2x8xf32>
    tpu.vector_store %arg6[%c0_65, %c62], %219 {strides = array<i32>} : memref<2x256xf32, #tpu.memory_space<vmem>>, vector<2x8xf32>,
    %cst_66 = arith.constant dense<0xFF800000> : vector<2xf32>
    %221 = vector.multi_reduction <maximumf>, %219, %cst_66 [1] : vector<2x8xf32> to vector<2xf32>
    %222 = vector.shape_cast %221 : vector<2xf32> to vector<2x1xf32>
    %223 = tpu.iota {dimensions = array<i32: 1>} : vector<2x8xi32>
    %224 = vector.broadcast %222 : vector<2x1xf32> to vector<2x8xf32>
    %225 = arith.cmpf oeq, %219, %224 : vector<2x8xf32>
    %c8_i32 = arith.constant 8 : i32
    %226 = vector.broadcast %c8_i32 : i32 to vector<2x8xi32>
    %227 = arith.select %225, %223, %226 : vector<2x8xi1>, vector<2x8xi32>
    %cst_67 = arith.constant dense<2147483647> : vector<2xi32>
    %228 = vector.multi_reduction <minsi>, %227, %cst_67 [1] : vector<2x8xi32> to vector<2xi32>
    %229 = vector.shape_cast %228 : vector<2xi32> to vector<2x1xi32>
    %230 = vector.broadcast %222 : vector<2x1xf32> to vector<2x8xf32>
    %231 = arith.subf %219, %230 : vector<2x8xf32>
    %232 = math.exp %231 : vector<2x8xf32>
    %cst_68 = arith.constant dense<0.000000e+00> : vector<2xf32>
    %233 = vector.multi_reduction <add>, %232, %cst_68 [1] : vector<2x8xf32> to vector<2xf32>
    %234 = vector.shape_cast %233 : vector<2xf32> to vector<2x1xf32>
    %235 = math.log %234 : vector<2x1xf32>
    %236 = arith.addf %222, %235 : vector<2x1xf32>
    %237 = vector.extract_strided_slice %20 {offsets = [0, 38], sizes = [2, 8], strides = [1, 1]} : vector<2x128xf32> to vector<2x8xf32>
    %cst_69 = arith.constant dense<0xFF800000> : vector<2xf32>
    %238 = vector.multi_reduction <maximumf>, %237, %cst_69 [1] : vector<2x8xf32> to vector<2xf32>
    %239 = vector.shape_cast %238 : vector<2xf32> to vector<2x1xf32>
    %240 = vector.broadcast %239 : vector<2x1xf32> to vector<2x8xf32>
    %241 = arith.subf %237, %240 : vector<2x8xf32>
    %242 = math.exp %241 : vector<2x8xf32>
    %cst_70 = arith.constant dense<0.000000e+00> : vector<2xf32>
    %243 = vector.multi_reduction <add>, %242, %cst_70 [1] : vector<2x8xf32> to vector<2xf32>
    %244 = vector.shape_cast %243 : vector<2xf32> to vector<2x1xf32>
    %245 = math.log %244 : vector<2x1xf32>
    %246 = arith.addf %239, %245 : vector<2x1xf32>
    %247 = vector.broadcast %246 : vector<2x1xf32> to vector<2x8xf32>
    %248 = arith.subf %237, %247 : vector<2x8xf32>
    %c0_71 = arith.constant 0 : index
    %c70 = arith.constant 70 : index
    %249 = vector.load %arg6[%c0_71, %c70] : memref<2x256xf32, #tpu.memory_space<vmem>>, vector<2x8xf32>
    tpu.vector_store %arg6[%c0_71, %c70], %248 {strides = array<i32>} : memref<2x256xf32, #tpu.memory_space<vmem>>, vector<2x8xf32>,
    %cst_72 = arith.constant dense<0xFF800000> : vector<2xf32>
    %250 = vector.multi_reduction <maximumf>, %248, %cst_72 [1] : vector<2x8xf32> to vector<2xf32>
    %251 = vector.shape_cast %250 : vector<2xf32> to vector<2x1xf32>
    %252 = tpu.iota {dimensions = array<i32: 1>} : vector<2x8xi32>
    %253 = vector.broadcast %251 : vector<2x1xf32> to vector<2x8xf32>
    %254 = arith.cmpf oeq, %248, %253 : vector<2x8xf32>
    %c8_i32_73 = arith.constant 8 : i32
    %255 = vector.broadcast %c8_i32_73 : i32 to vector<2x8xi32>
    %256 = arith.select %254, %252, %255 : vector<2x8xi1>, vector<2x8xi32>
    %cst_74 = arith.constant dense<2147483647> : vector<2xi32>
    %257 = vector.multi_reduction <minsi>, %256, %cst_74 [1] : vector<2x8xi32> to vector<2xi32>
    %258 = vector.shape_cast %257 : vector<2xi32> to vector<2x1xi32>
    %259 = vector.broadcast %251 : vector<2x1xf32> to vector<2x8xf32>
    %260 = arith.subf %248, %259 : vector<2x8xf32>
    %261 = math.exp %260 : vector<2x8xf32>
    %cst_75 = arith.constant dense<0.000000e+00> : vector<2xf32>
    %262 = vector.multi_reduction <add>, %261, %cst_75 [1] : vector<2x8xf32> to vector<2xf32>
    %263 = vector.shape_cast %262 : vector<2xf32> to vector<2x1xf32>
    %264 = math.log %263 : vector<2x1xf32>
    %265 = arith.addf %251, %264 : vector<2x1xf32>
    %266 = vector.extract_strided_slice %20 {offsets = [0, 46], sizes = [2, 8], strides = [1, 1]} : vector<2x128xf32> to vector<2x8xf32>
    %cst_76 = arith.constant dense<0xFF800000> : vector<2xf32>
    %267 = vector.multi_reduction <maximumf>, %266, %cst_76 [1] : vector<2x8xf32> to vector<2xf32>
    %268 = vector.shape_cast %267 : vector<2xf32> to vector<2x1xf32>
    %269 = vector.broadcast %268 : vector<2x1xf32> to vector<2x8xf32>
    %270 = arith.subf %266, %269 : vector<2x8xf32>
    %271 = math.exp %270 : vector<2x8xf32>
    %cst_77 = arith.constant dense<0.000000e+00> : vector<2xf32>
    %272 = vector.multi_reduction <add>, %271, %cst_77 [1] : vector<2x8xf32> to vector<2xf32>
    %273 = vector.shape_cast %272 : vector<2xf32> to vector<2x1xf32>
    %274 = math.log %273 : vector<2x1xf32>
    %275 = arith.addf %268, %274 : vector<2x1xf32>
    %276 = vector.broadcast %275 : vector<2x1xf32> to vector<2x8xf32>
    %277 = arith.subf %266, %276 : vector<2x8xf32>
    %c0_78 = arith.constant 0 : index
    %c78 = arith.constant 78 : index
    %278 = vector.load %arg6[%c0_78, %c78] : memref<2x256xf32, #tpu.memory_space<vmem>>, vector<2x8xf32>
    tpu.vector_store %arg6[%c0_78, %c78], %277 {strides = array<i32>} : memref<2x256xf32, #tpu.memory_space<vmem>>, vector<2x8xf32>,
    %cst_79 = arith.constant dense<0xFF800000> : vector<2xf32>
    %279 = vector.multi_reduction <maximumf>, %277, %cst_79 [1] : vector<2x8xf32> to vector<2xf32>
    %280 = vector.shape_cast %279 : vector<2xf32> to vector<2x1xf32>
    %281 = tpu.iota {dimensions = array<i32: 1>} : vector<2x8xi32>
    %282 = vector.broadcast %280 : vector<2x1xf32> to vector<2x8xf32>
    %283 = arith.cmpf oeq, %277, %282 : vector<2x8xf32>
    %c8_i32_80 = arith.constant 8 : i32
    %284 = vector.broadcast %c8_i32_80 : i32 to vector<2x8xi32>
    %285 = arith.select %283, %281, %284 : vector<2x8xi1>, vector<2x8xi32>
    %cst_81 = arith.constant dense<2147483647> : vector<2xi32>
    %286 = vector.multi_reduction <minsi>, %285, %cst_81 [1] : vector<2x8xi32> to vector<2xi32>
    %287 = vector.shape_cast %286 : vector<2xi32> to vector<2x1xi32>
    %288 = vector.broadcast %280 : vector<2x1xf32> to vector<2x8xf32>
    %289 = arith.subf %277, %288 : vector<2x8xf32>
    %290 = math.exp %289 : vector<2x8xf32>
    %cst_82 = arith.constant dense<0.000000e+00> : vector<2xf32>
    %291 = vector.multi_reduction <add>, %290, %cst_82 [1] : vector<2x8xf32> to vector<2xf32>
    %292 = vector.shape_cast %291 : vector<2xf32> to vector<2x1xf32>
    %293 = math.log %292 : vector<2x1xf32>
    %294 = arith.addf %280, %293 : vector<2x1xf32>
    %295 = vector.extract_strided_slice %20 {offsets = [0, 54], sizes = [2, 8], strides = [1, 1]} : vector<2x128xf32> to vector<2x8xf32>
    %cst_83 = arith.constant dense<0xFF800000> : vector<2xf32>
    %296 = vector.multi_reduction <maximumf>, %295, %cst_83 [1] : vector<2x8xf32> to vector<2xf32>
    %297 = vector.shape_cast %296 : vector<2xf32> to vector<2x1xf32>
    %298 = vector.broadcast %297 : vector<2x1xf32> to vector<2x8xf32>
    %299 = arith.subf %295, %298 : vector<2x8xf32>
    %300 = math.exp %299 : vector<2x8xf32>
    %cst_84 = arith.constant dense<0.000000e+00> : vector<2xf32>
    %301 = vector.multi_reduction <add>, %300, %cst_84 [1] : vector<2x8xf32> to vector<2xf32>
    %302 = vector.shape_cast %301 : vector<2xf32> to vector<2x1xf32>
    %303 = math.log %302 : vector<2x1xf32>
    %304 = arith.addf %297, %303 : vector<2x1xf32>
    %305 = vector.broadcast %304 : vector<2x1xf32> to vector<2x8xf32>
    %306 = arith.subf %295, %305 : vector<2x8xf32>
    %c0_85 = arith.constant 0 : index
    %c86 = arith.constant 86 : index
    %307 = vector.load %arg6[%c0_85, %c86] : memref<2x256xf32, #tpu.memory_space<vmem>>, vector<2x8xf32>
    tpu.vector_store %arg6[%c0_85, %c86], %306 {strides = array<i32>} : memref<2x256xf32, #tpu.memory_space<vmem>>, vector<2x8xf32>,
    %cst_86 = arith.constant dense<0xFF800000> : vector<2xf32>
    %308 = vector.multi_reduction <maximumf>, %306, %cst_86 [1] : vector<2x8xf32> to vector<2xf32>
    %309 = vector.shape_cast %308 : vector<2xf32> to vector<2x1xf32>
    %310 = tpu.iota {dimensions = array<i32: 1>} : vector<2x8xi32>
    %311 = vector.broadcast %309 : vector<2x1xf32> to vector<2x8xf32>
    %312 = arith.cmpf oeq, %306, %311 : vector<2x8xf32>
    %c8_i32_87 = arith.constant 8 : i32
    %313 = vector.broadcast %c8_i32_87 : i32 to vector<2x8xi32>
    %314 = arith.select %312, %310, %313 : vector<2x8xi1>, vector<2x8xi32>
    %cst_88 = arith.constant dense<2147483647> : vector<2xi32>
    %315 = vector.multi_reduction <minsi>, %314, %cst_88 [1] : vector<2x8xi32> to vector<2xi32>
    %316 = vector.shape_cast %315 : vector<2xi32> to vector<2x1xi32>
    %317 = vector.broadcast %309 : vector<2x1xf32> to vector<2x8xf32>
    %318 = arith.subf %306, %317 : vector<2x8xf32>
    %319 = math.exp %318 : vector<2x8xf32>
    %cst_89 = arith.constant dense<0.000000e+00> : vector<2xf32>
    %320 = vector.multi_reduction <add>, %319, %cst_89 [1] : vector<2x8xf32> to vector<2xf32>
    %321 = vector.shape_cast %320 : vector<2xf32> to vector<2x1xf32>
    %322 = math.log %321 : vector<2x1xf32>
    %323 = arith.addf %309, %322 : vector<2x1xf32>
    %324 = vector.extract_strided_slice %20 {offsets = [0, 62], sizes = [2, 8], strides = [1, 1]} : vector<2x128xf32> to vector<2x8xf32>
    %cst_90 = arith.constant dense<0xFF800000> : vector<2xf32>
    %325 = vector.multi_reduction <maximumf>, %324, %cst_90 [1] : vector<2x8xf32> to vector<2xf32>
    %326 = vector.shape_cast %325 : vector<2xf32> to vector<2x1xf32>
    %327 = vector.broadcast %326 : vector<2x1xf32> to vector<2x8xf32>
    %328 = arith.subf %324, %327 : vector<2x8xf32>
    %329 = math.exp %328 : vector<2x8xf32>
    %cst_91 = arith.constant dense<0.000000e+00> : vector<2xf32>
    %330 = vector.multi_reduction <add>, %329, %cst_91 [1] : vector<2x8xf32> to vector<2xf32>
    %331 = vector.shape_cast %330 : vector<2xf32> to vector<2x1xf32>
    %332 = math.log %331 : vector<2x1xf32>
    %333 = arith.addf %326, %332 : vector<2x1xf32>
    %334 = vector.broadcast %333 : vector<2x1xf32> to vector<2x8xf32>
    %335 = arith.subf %324, %334 : vector<2x8xf32>
    %c0_92 = arith.constant 0 : index
    %c94 = arith.constant 94 : index
    %336 = vector.load %arg6[%c0_92, %c94] : memref<2x256xf32, #tpu.memory_space<vmem>>, vector<2x8xf32>
    tpu.vector_store %arg6[%c0_92, %c94], %335 {strides = array<i32>} : memref<2x256xf32, #tpu.memory_space<vmem>>, vector<2x8xf32>,
    %cst_93 = arith.constant dense<0xFF800000> : vector<2xf32>
    %337 = vector.multi_reduction <maximumf>, %335, %cst_93 [1] : vector<2x8xf32> to vector<2xf32>
    %338 = vector.shape_cast %337 : vector<2xf32> to vector<2x1xf32>
    %339 = tpu.iota {dimensions = array<i32: 1>} : vector<2x8xi32>
    %340 = vector.broadcast %338 : vector<2x1xf32> to vector<2x8xf32>
    %341 = arith.cmpf oeq, %335, %340 : vector<2x8xf32>
    %c8_i32_94 = arith.constant 8 : i32
    %342 = vector.broadcast %c8_i32_94 : i32 to vector<2x8xi32>
    %343 = arith.select %341, %339, %342 : vector<2x8xi1>, vector<2x8xi32>
    %cst_95 = arith.constant dense<2147483647> : vector<2xi32>
    %344 = vector.multi_reduction <minsi>, %343, %cst_95 [1] : vector<2x8xi32> to vector<2xi32>
    %345 = vector.shape_cast %344 : vector<2xi32> to vector<2x1xi32>
    %346 = vector.broadcast %338 : vector<2x1xf32> to vector<2x8xf32>
    %347 = arith.subf %335, %346 : vector<2x8xf32>
    %348 = math.exp %347 : vector<2x8xf32>
    %cst_96 = arith.constant dense<0.000000e+00> : vector<2xf32>
    %349 = vector.multi_reduction <add>, %348, %cst_96 [1] : vector<2x8xf32> to vector<2xf32>
    %350 = vector.shape_cast %349 : vector<2xf32> to vector<2x1xf32>
    %351 = math.log %350 : vector<2x1xf32>
    %352 = arith.addf %338, %351 : vector<2x1xf32>
    %353 = vector.extract_strided_slice %20 {offsets = [0, 70], sizes = [2, 8], strides = [1, 1]} : vector<2x128xf32> to vector<2x8xf32>
    %cst_97 = arith.constant dense<0xFF800000> : vector<2xf32>
    %354 = vector.multi_reduction <maximumf>, %353, %cst_97 [1] : vector<2x8xf32> to vector<2xf32>
    %355 = vector.shape_cast %354 : vector<2xf32> to vector<2x1xf32>
    %356 = vector.broadcast %355 : vector<2x1xf32> to vector<2x8xf32>
    %357 = arith.subf %353, %356 : vector<2x8xf32>
    %358 = math.exp %357 : vector<2x8xf32>
    %cst_98 = arith.constant dense<0.000000e+00> : vector<2xf32>
    %359 = vector.multi_reduction <add>, %358, %cst_98 [1] : vector<2x8xf32> to vector<2xf32>
    %360 = vector.shape_cast %359 : vector<2xf32> to vector<2x1xf32>
    %361 = math.log %360 : vector<2x1xf32>
    %362 = arith.addf %355, %361 : vector<2x1xf32>
    %363 = vector.broadcast %362 : vector<2x1xf32> to vector<2x8xf32>
    %364 = arith.subf %353, %363 : vector<2x8xf32>
    %c0_99 = arith.constant 0 : index
    %c102 = arith.constant 102 : index
    %365 = vector.load %arg6[%c0_99, %c102] : memref<2x256xf32, #tpu.memory_space<vmem>>, vector<2x8xf32>
    tpu.vector_store %arg6[%c0_99, %c102], %364 {strides = array<i32>} : memref<2x256xf32, #tpu.memory_space<vmem>>, vector<2x8xf32>,
    %cst_100 = arith.constant dense<0xFF800000> : vector<2xf32>
    %366 = vector.multi_reduction <maximumf>, %364, %cst_100 [1] : vector<2x8xf32> to vector<2xf32>
    %367 = vector.shape_cast %366 : vector<2xf32> to vector<2x1xf32>
    %368 = tpu.iota {dimensions = array<i32: 1>} : vector<2x8xi32>
    %369 = vector.broadcast %367 : vector<2x1xf32> to vector<2x8xf32>
    %370 = arith.cmpf oeq, %364, %369 : vector<2x8xf32>
    %c8_i32_101 = arith.constant 8 : i32
    %371 = vector.broadcast %c8_i32_101 : i32 to vector<2x8xi32>
    %372 = arith.select %370, %368, %371 : vector<2x8xi1>, vector<2x8xi32>
    %cst_102 = arith.constant dense<2147483647> : vector<2xi32>
    %373 = vector.multi_reduction <minsi>, %372, %cst_102 [1] : vector<2x8xi32> to vector<2xi32>
    %374 = vector.shape_cast %373 : vector<2xi32> to vector<2x1xi32>
    %375 = vector.broadcast %367 : vector<2x1xf32> to vector<2x8xf32>
    %376 = arith.subf %364, %375 : vector<2x8xf32>
    %377 = math.exp %376 : vector<2x8xf32>
    %cst_103 = arith.constant dense<0.000000e+00> : vector<2xf32>
    %378 = vector.multi_reduction <add>, %377, %cst_103 [1] : vector<2x8xf32> to vector<2xf32>
    %379 = vector.shape_cast %378 : vector<2xf32> to vector<2x1xf32>
    %380 = math.log %379 : vector<2x1xf32>
    %381 = arith.addf %367, %380 : vector<2x1xf32>
    %382 = vector.extract_strided_slice %20 {offsets = [0, 78], sizes = [2, 8], strides = [1, 1]} : vector<2x128xf32> to vector<2x8xf32>
    %cst_104 = arith.constant dense<0xFF800000> : vector<2xf32>
    %383 = vector.multi_reduction <maximumf>, %382, %cst_104 [1] : vector<2x8xf32> to vector<2xf32>
    %384 = vector.shape_cast %383 : vector<2xf32> to vector<2x1xf32>
    %385 = vector.broadcast %384 : vector<2x1xf32> to vector<2x8xf32>
    %386 = arith.subf %382, %385 : vector<2x8xf32>
    %387 = math.exp %386 : vector<2x8xf32>
    %cst_105 = arith.constant dense<0.000000e+00> : vector<2xf32>
    %388 = vector.multi_reduction <add>, %387, %cst_105 [1] : vector<2x8xf32> to vector<2xf32>
    %389 = vector.shape_cast %388 : vector<2xf32> to vector<2x1xf32>
    %390 = math.log %389 : vector<2x1xf32>
    %391 = arith.addf %384, %390 : vector<2x1xf32>
    %392 = vector.broadcast %391 : vector<2x1xf32> to vector<2x8xf32>
    %393 = arith.subf %382, %392 : vector<2x8xf32>
    %c0_106 = arith.constant 0 : index
    %c110 = arith.constant 110 : index
    %394 = vector.load %arg6[%c0_106, %c110] : memref<2x256xf32, #tpu.memory_space<vmem>>, vector<2x8xf32>
    tpu.vector_store %arg6[%c0_106, %c110], %393 {strides = array<i32>} : memref<2x256xf32, #tpu.memory_space<vmem>>, vector<2x8xf32>,
    %cst_107 = arith.constant dense<0xFF800000> : vector<2xf32>
    %395 = vector.multi_reduction <maximumf>, %393, %cst_107 [1] : vector<2x8xf32> to vector<2xf32>
    %396 = vector.shape_cast %395 : vector<2xf32> to vector<2x1xf32>
    %397 = tpu.iota {dimensions = array<i32: 1>} : vector<2x8xi32>
    %398 = vector.broadcast %396 : vector<2x1xf32> to vector<2x8xf32>
    %399 = arith.cmpf oeq, %393, %398 : vector<2x8xf32>
    %c8_i32_108 = arith.constant 8 : i32
    %400 = vector.broadcast %c8_i32_108 : i32 to vector<2x8xi32>
    %401 = arith.select %399, %397, %400 : vector<2x8xi1>, vector<2x8xi32>
    %cst_109 = arith.constant dense<2147483647> : vector<2xi32>
    %402 = vector.multi_reduction <minsi>, %401, %cst_109 [1] : vector<2x8xi32> to vector<2xi32>
    %403 = vector.shape_cast %402 : vector<2xi32> to vector<2x1xi32>
    %404 = vector.broadcast %396 : vector<2x1xf32> to vector<2x8xf32>
    %405 = arith.subf %393, %404 : vector<2x8xf32>
    %406 = math.exp %405 : vector<2x8xf32>
    %cst_110 = arith.constant dense<0.000000e+00> : vector<2xf32>
    %407 = vector.multi_reduction <add>, %406, %cst_110 [1] : vector<2x8xf32> to vector<2xf32>
    %408 = vector.shape_cast %407 : vector<2xf32> to vector<2x1xf32>
    %409 = math.log %408 : vector<2x1xf32>
    %410 = arith.addf %396, %409 : vector<2x1xf32>
    %411 = vector.extract_strided_slice %20 {offsets = [0, 86], sizes = [2, 8], strides = [1, 1]} : vector<2x128xf32> to vector<2x8xf32>
    %cst_111 = arith.constant dense<0xFF800000> : vector<2xf32>
    %412 = vector.multi_reduction <maximumf>, %411, %cst_111 [1] : vector<2x8xf32> to vector<2xf32>
    %413 = vector.shape_cast %412 : vector<2xf32> to vector<2x1xf32>
    %414 = vector.broadcast %413 : vector<2x1xf32> to vector<2x8xf32>
    %415 = arith.subf %411, %414 : vector<2x8xf32>
    %416 = math.exp %415 : vector<2x8xf32>
    %cst_112 = arith.constant dense<0.000000e+00> : vector<2xf32>
    %417 = vector.multi_reduction <add>, %416, %cst_112 [1] : vector<2x8xf32> to vector<2xf32>
    %418 = vector.shape_cast %417 : vector<2xf32> to vector<2x1xf32>
    %419 = math.log %418 : vector<2x1xf32>
    %420 = arith.addf %413, %419 : vector<2x1xf32>
    %421 = vector.broadcast %420 : vector<2x1xf32> to vector<2x8xf32>
    %422 = arith.subf %411, %421 : vector<2x8xf32>
    %c0_113 = arith.constant 0 : index
    %c118 = arith.constant 118 : index
    %423 = vector.load %arg6[%c0_113, %c118] : memref<2x256xf32, #tpu.memory_space<vmem>>, vector<2x8xf32>
    tpu.vector_store %arg6[%c0_113, %c118], %422 {strides = array<i32>} : memref<2x256xf32, #tpu.memory_space<vmem>>, vector<2x8xf32>,
    %cst_114 = arith.constant dense<0xFF800000> : vector<2xf32>
    %424 = vector.multi_reduction <maximumf>, %422, %cst_114 [1] : vector<2x8xf32> to vector<2xf32>
    %425 = vector.shape_cast %424 : vector<2xf32> to vector<2x1xf32>
    %426 = tpu.iota {dimensions = array<i32: 1>} : vector<2x8xi32>
    %427 = vector.broadcast %425 : vector<2x1xf32> to vector<2x8xf32>
    %428 = arith.cmpf oeq, %422, %427 : vector<2x8xf32>
    %c8_i32_115 = arith.constant 8 : i32
    %429 = vector.broadcast %c8_i32_115 : i32 to vector<2x8xi32>
    %430 = arith.select %428, %426, %429 : vector<2x8xi1>, vector<2x8xi32>
    %cst_116 = arith.constant dense<2147483647> : vector<2xi32>
    %431 = vector.multi_reduction <minsi>, %430, %cst_116 [1] : vector<2x8xi32> to vector<2xi32>
    %432 = vector.shape_cast %431 : vector<2xi32> to vector<2x1xi32>
    %433 = vector.broadcast %425 : vector<2x1xf32> to vector<2x8xf32>
    %434 = arith.subf %422, %433 : vector<2x8xf32>
    %435 = math.exp %434 : vector<2x8xf32>
    %cst_117 = arith.constant dense<0.000000e+00> : vector<2xf32>
    %436 = vector.multi_reduction <add>, %435, %cst_117 [1] : vector<2x8xf32> to vector<2xf32>
    %437 = vector.shape_cast %436 : vector<2xf32> to vector<2x1xf32>
    %438 = math.log %437 : vector<2x1xf32>
    %439 = arith.addf %425, %438 : vector<2x1xf32>
    %cst_118 = arith.constant 0.000000e+00 : f32
    %440 = vector.broadcast %cst_118 : f32 to vector<2x1xf32>
    %cst_119 = arith.constant 0.000000e+00 : f32
    %441 = vector.broadcast %cst_119 : f32 to vector<2x1xf32>
    %442 = arith.addf %440, %62 : vector<2x1xf32>
    %443 = arith.addf %441, %48 : vector<2x1xf32>
    %c0_120 = arith.constant 0 : index
    %c0_121 = arith.constant 0 : index
    %444 = vector.load %arg7[%c0_120, %c0_121] : memref<2x128xi32, #tpu.memory_space<vmem>>, vector<2x1xi32>
    tpu.vector_store %arg7[%c0_120, %c0_121], %55 {strides = array<i32>} : memref<2x128xi32, #tpu.memory_space<vmem>>, vector<2x1xi32>,
    %445 = arith.addf %442, %91 : vector<2x1xf32>
    %446 = arith.addf %443, %77 : vector<2x1xf32>
    %c0_122 = arith.constant 0 : index
    %c1 = arith.constant 1 : index
    %447 = vector.load %arg7[%c0_122, %c1] : memref<2x128xi32, #tpu.memory_space<vmem>>, vector<2x1xi32>
    tpu.vector_store %arg7[%c0_122, %c1], %84 {strides = array<i32>} : memref<2x128xi32, #tpu.memory_space<vmem>>, vector<2x1xi32>,
    %448 = arith.addf %445, %120 : vector<2x1xf32>
    %449 = arith.addf %446, %106 : vector<2x1xf32>
    %c0_123 = arith.constant 0 : index
    %c2 = arith.constant 2 : index
    %450 = vector.load %arg7[%c0_123, %c2] : memref<2x128xi32, #tpu.memory_space<vmem>>, vector<2x1xi32>
    tpu.vector_store %arg7[%c0_123, %c2], %113 {strides = array<i32>} : memref<2x128xi32, #tpu.memory_space<vmem>>, vector<2x1xi32>,
    %451 = vector.extract_strided_slice %32 {offsets = [0, 0], sizes = [2, 1], strides = [1, 1]} : vector<2x6xf32> to vector<2x1xf32>
    %452 = arith.addf %448, %451 : vector<2x1xf32>
    %453 = arith.addf %449, %451 : vector<2x1xf32>
    %cst_124 = arith.constant 0.000000e+00 : f32
    %454 = vector.broadcast %cst_124 : f32 to vector<2x1xf32>
    %cst_125 = arith.constant 0.000000e+00 : f32
    %455 = vector.broadcast %cst_125 : f32 to vector<2x1xf32>
    %456 = arith.addf %454, %236 : vector<2x1xf32>
    %457 = arith.addf %455, %222 : vector<2x1xf32>
    %c0_126 = arith.constant 0 : index
    %c3 = arith.constant 3 : index
    %458 = vector.load %arg7[%c0_126, %c3] : memref<2x128xi32, #tpu.memory_space<vmem>>, vector<2x1xi32>
    tpu.vector_store %arg7[%c0_126, %c3], %229 {strides = array<i32>} : memref<2x128xi32, #tpu.memory_space<vmem>>, vector<2x1xi32>,
    %459 = arith.addf %456, %265 : vector<2x1xf32>
    %460 = arith.addf %457, %251 : vector<2x1xf32>
    %c0_127 = arith.constant 0 : index
    %c4 = arith.constant 4 : index
    %461 = vector.load %arg7[%c0_127, %c4] : memref<2x128xi32, #tpu.memory_space<vmem>>, vector<2x1xi32>
    tpu.vector_store %arg7[%c0_127, %c4], %258 {strides = array<i32>} : memref<2x128xi32, #tpu.memory_space<vmem>>, vector<2x1xi32>,
    %462 = vector.extract_strided_slice %32 {offsets = [0, 1], sizes = [2, 1], strides = [1, 1]} : vector<2x6xf32> to vector<2x1xf32>
    %463 = arith.addf %459, %462 : vector<2x1xf32>
    %464 = arith.addf %460, %462 : vector<2x1xf32>
    %cst_128 = arith.constant 0.000000e+00 : f32
    %465 = vector.broadcast %cst_128 : f32 to vector<2x1xf32>
    %cst_129 = arith.constant 0.000000e+00 : f32
    %466 = vector.broadcast %cst_129 : f32 to vector<2x1xf32>
    %467 = arith.addf %465, %294 : vector<2x1xf32>
    %468 = arith.addf %466, %280 : vector<2x1xf32>
    %c0_130 = arith.constant 0 : index
    %c6 = arith.constant 6 : index
    %469 = vector.load %arg7[%c0_130, %c6] : memref<2x128xi32, #tpu.memory_space<vmem>>, vector<2x1xi32>
    tpu.vector_store %arg7[%c0_130, %c6], %287 {strides = array<i32>} : memref<2x128xi32, #tpu.memory_space<vmem>>, vector<2x1xi32>,
    %470 = arith.addf %467, %323 : vector<2x1xf32>
    %471 = arith.addf %468, %309 : vector<2x1xf32>
    %c0_131 = arith.constant 0 : index
    %c7 = arith.constant 7 : index
    %472 = vector.load %arg7[%c0_131, %c7] : memref<2x128xi32, #tpu.memory_space<vmem>>, vector<2x1xi32>
    tpu.vector_store %arg7[%c0_131, %c7], %316 {strides = array<i32>} : memref<2x128xi32, #tpu.memory_space<vmem>>, vector<2x1xi32>,
    %473 = arith.addf %470, %149 : vector<2x1xf32>
    %474 = arith.addf %471, %135 : vector<2x1xf32>
    %c0_132 = arith.constant 0 : index
    %c8 = arith.constant 8 : index
    %475 = vector.load %arg7[%c0_132, %c8] : memref<2x128xi32, #tpu.memory_space<vmem>>, vector<2x1xi32>
    tpu.vector_store %arg7[%c0_132, %c8], %142 {strides = array<i32>} : memref<2x128xi32, #tpu.memory_space<vmem>>, vector<2x1xi32>,
    %476 = vector.extract_strided_slice %32 {offsets = [0, 2], sizes = [2, 1], strides = [1, 1]} : vector<2x6xf32> to vector<2x1xf32>
    %477 = arith.addf %473, %476 : vector<2x1xf32>
    %478 = arith.addf %474, %476 : vector<2x1xf32>
    %cst_133 = arith.constant 0.000000e+00 : f32
    %479 = vector.broadcast %cst_133 : f32 to vector<2x1xf32>
    %cst_134 = arith.constant 0.000000e+00 : f32
    %480 = vector.broadcast %cst_134 : f32 to vector<2x1xf32>
    %481 = arith.addf %479, %178 : vector<2x1xf32>
    %482 = arith.addf %480, %164 : vector<2x1xf32>
    %c0_135 = arith.constant 0 : index
    %c9 = arith.constant 9 : index
    %483 = vector.load %arg7[%c0_135, %c9] : memref<2x128xi32, #tpu.memory_space<vmem>>, vector<2x1xi32>
    tpu.vector_store %arg7[%c0_135, %c9], %171 {strides = array<i32>} : memref<2x128xi32, #tpu.memory_space<vmem>>, vector<2x1xi32>,
    %484 = vector.extract_strided_slice %32 {offsets = [0, 3], sizes = [2, 1], strides = [1, 1]} : vector<2x6xf32> to vector<2x1xf32>
    %485 = arith.addf %481, %484 : vector<2x1xf32>
    %486 = arith.addf %482, %484 : vector<2x1xf32>
    %cst_136 = arith.constant 0.000000e+00 : f32
    %487 = vector.broadcast %cst_136 : f32 to vector<2x1xf32>
    %cst_137 = arith.constant 0.000000e+00 : f32
    %488 = vector.broadcast %cst_137 : f32 to vector<2x1xf32>
    %489 = arith.addf %487, %207 : vector<2x1xf32>
    %490 = arith.addf %488, %193 : vector<2x1xf32>
    %c0_138 = arith.constant 0 : index
    %c12 = arith.constant 12 : index
    %491 = vector.load %arg7[%c0_138, %c12] : memref<2x128xi32, #tpu.memory_space<vmem>>, vector<2x1xi32>
    tpu.vector_store %arg7[%c0_138, %c12], %200 {strides = array<i32>} : memref<2x128xi32, #tpu.memory_space<vmem>>, vector<2x1xi32>,
    %492 = arith.addf %489, %352 : vector<2x1xf32>
    %493 = arith.addf %490, %338 : vector<2x1xf32>
    %c0_139 = arith.constant 0 : index
    %c13 = arith.constant 13 : index
    %494 = vector.load %arg7[%c0_139, %c13] : memref<2x128xi32, #tpu.memory_space<vmem>>, vector<2x1xi32>
    tpu.vector_store %arg7[%c0_139, %c13], %345 {strides = array<i32>} : memref<2x128xi32, #tpu.memory_space<vmem>>, vector<2x1xi32>,
    %495 = vector.extract_strided_slice %32 {offsets = [0, 4], sizes = [2, 1], strides = [1, 1]} : vector<2x6xf32> to vector<2x1xf32>
    %496 = arith.addf %492, %495 : vector<2x1xf32>
    %497 = arith.addf %493, %495 : vector<2x1xf32>
    %cst_140 = arith.constant 0.000000e+00 : f32
    %498 = vector.broadcast %cst_140 : f32 to vector<2x1xf32>
    %cst_141 = arith.constant 0.000000e+00 : f32
    %499 = vector.broadcast %cst_141 : f32 to vector<2x1xf32>
    %500 = arith.addf %498, %381 : vector<2x1xf32>
    %501 = arith.addf %499, %367 : vector<2x1xf32>
    %c0_142 = arith.constant 0 : index
    %c15 = arith.constant 15 : index
    %502 = vector.load %arg7[%c0_142, %c15] : memref<2x128xi32, #tpu.memory_space<vmem>>, vector<2x1xi32>
    tpu.vector_store %arg7[%c0_142, %c15], %374 {strides = array<i32>} : memref<2x128xi32, #tpu.memory_space<vmem>>, vector<2x1xi32>,
    %503 = arith.addf %500, %410 : vector<2x1xf32>
    %504 = arith.addf %501, %396 : vector<2x1xf32>
    %c0_143 = arith.constant 0 : index
    %c16 = arith.constant 16 : index
    %505 = vector.load %arg7[%c0_143, %c16] : memref<2x128xi32, #tpu.memory_space<vmem>>, vector<2x1xi32>
    tpu.vector_store %arg7[%c0_143, %c16], %403 {strides = array<i32>} : memref<2x128xi32, #tpu.memory_space<vmem>>, vector<2x1xi32>,
    %506 = arith.addf %503, %439 : vector<2x1xf32>
    %507 = arith.addf %504, %425 : vector<2x1xf32>
    %c0_144 = arith.constant 0 : index
    %c17 = arith.constant 17 : index
    %508 = vector.load %arg7[%c0_144, %c17] : memref<2x128xi32, #tpu.memory_space<vmem>>, vector<2x1xi32>
    tpu.vector_store %arg7[%c0_144, %c17], %432 {strides = array<i32>} : memref<2x128xi32, #tpu.memory_space<vmem>>, vector<2x1xi32>,
    %509 = vector.extract_strided_slice %32 {offsets = [0, 5], sizes = [2, 1], strides = [1, 1]} : vector<2x6xf32> to vector<2x1xf32>
    %510 = arith.addf %506, %509 : vector<2x1xf32>
    %511 = arith.addf %507, %509 : vector<2x1xf32>
    %512 = arith.maximumf %452, %463 : vector<2x1xf32>
    %513 = arith.maximumf %512, %477 : vector<2x1xf32>
    %514 = arith.maximumf %513, %485 : vector<2x1xf32>
    %515 = arith.maximumf %514, %496 : vector<2x1xf32>
    %516 = arith.maximumf %515, %510 : vector<2x1xf32>
    %cst_145 = arith.constant 0.000000e+00 : f32
    %517 = vector.broadcast %cst_145 : f32 to vector<2x1xf32>
    %518 = arith.subf %452, %516 : vector<2x1xf32>
    %519 = math.exp %518 : vector<2x1xf32>
    %520 = arith.addf %517, %519 : vector<2x1xf32>
    %521 = arith.subf %463, %516 : vector<2x1xf32>
    %522 = math.exp %521 : vector<2x1xf32>
    %523 = arith.addf %520, %522 : vector<2x1xf32>
    %524 = arith.subf %477, %516 : vector<2x1xf32>
    %525 = math.exp %524 : vector<2x1xf32>
    %526 = arith.addf %523, %525 : vector<2x1xf32>
    %527 = arith.subf %485, %516 : vector<2x1xf32>
    %528 = math.exp %527 : vector<2x1xf32>
    %529 = arith.addf %526, %528 : vector<2x1xf32>
    %530 = arith.subf %496, %516 : vector<2x1xf32>
    %531 = math.exp %530 : vector<2x1xf32>
    %532 = arith.addf %529, %531 : vector<2x1xf32>
    %533 = arith.subf %510, %516 : vector<2x1xf32>
    %534 = math.exp %533 : vector<2x1xf32>
    %535 = arith.addf %532, %534 : vector<2x1xf32>
    %536 = math.log %535 : vector<2x1xf32>
    %537 = arith.addf %516, %536 : vector<2x1xf32>
    %c0_146 = arith.constant 0 : index
    %c132 = arith.constant 132 : index
    %538 = vector.load %arg6[%c0_146, %c132] : memref<2x256xf32, #tpu.memory_space<vmem>>, vector<2x1xf32>
    tpu.vector_store %arg6[%c0_146, %c132], %537 {strides = array<i32>} : memref<2x256xf32, #tpu.memory_space<vmem>>, vector<2x1xf32>,
    %c0_147 = arith.constant 0 : index
    %c126 = arith.constant 126 : index
    %539 = vector.load %arg6[%c0_147, %c126] : memref<2x256xf32, #tpu.memory_space<vmem>>, vector<2x1xf32>
    tpu.vector_store %arg6[%c0_147, %c126], %453 {strides = array<i32>} : memref<2x256xf32, #tpu.memory_space<vmem>>, vector<2x1xf32>,
    %c0_148 = arith.constant 0 : index
    %c127 = arith.constant 127 : index
    %540 = vector.load %arg6[%c0_148, %c127] : memref<2x256xf32, #tpu.memory_space<vmem>>, vector<2x1xf32>
    tpu.vector_store %arg6[%c0_148, %c127], %464 {strides = array<i32>} : memref<2x256xf32, #tpu.memory_space<vmem>>, vector<2x1xf32>,
    %c0_149 = arith.constant 0 : index
    %c128 = arith.constant 128 : index
    %541 = vector.load %arg6[%c0_149, %c128] : memref<2x256xf32, #tpu.memory_space<vmem>>, vector<2x1xf32>
    tpu.vector_store %arg6[%c0_149, %c128], %478 {strides = array<i32>} : memref<2x256xf32, #tpu.memory_space<vmem>>, vector<2x1xf32>,
    %c0_150 = arith.constant 0 : index
    %c129 = arith.constant 129 : index
    %542 = vector.load %arg6[%c0_150, %c129] : memref<2x256xf32, #tpu.memory_space<vmem>>, vector<2x1xf32>
    tpu.vector_store %arg6[%c0_150, %c129], %486 {strides = array<i32>} : memref<2x256xf32, #tpu.memory_space<vmem>>, vector<2x1xf32>,
    %c0_151 = arith.constant 0 : index
    %c130 = arith.constant 130 : index
    %543 = vector.load %arg6[%c0_151, %c130] : memref<2x256xf32, #tpu.memory_space<vmem>>, vector<2x1xf32>
    tpu.vector_store %arg6[%c0_151, %c130], %497 {strides = array<i32>} : memref<2x256xf32, #tpu.memory_space<vmem>>, vector<2x1xf32>,
    %c0_152 = arith.constant 0 : index
    %c131 = arith.constant 131 : index
    %544 = vector.load %arg6[%c0_152, %c131] : memref<2x256xf32, #tpu.memory_space<vmem>>, vector<2x1xf32>
    tpu.vector_store %arg6[%c0_152, %c131], %511 {strides = array<i32>} : memref<2x256xf32, #tpu.memory_space<vmem>>, vector<2x1xf32>,
    return
  }
  func.func @transform_0(%arg0: i32) -> (i32, i32) {
    %c0_i32 = arith.constant 0 : i32
    %c0_i32_0 = arith.constant 0 : i32
    return %arg0, %c0_i32 : i32, i32
  }
  func.func @transform_1(%arg0: i32) -> (i32, i32) {
    %c0_i32 = arith.constant 0 : i32
    %c0_i32_0 = arith.constant 0 : i32
    %c0_i32_1 = arith.constant 0 : i32
    return %c0_i32, %c0_i32_0 : i32, i32
  }
  func.func @transform_2(%arg0: i32) -> (i32, i32) {
    %c0_i32 = arith.constant 0 : i32
    %c0_i32_0 = arith.constant 0 : i32
    %c0_i32_1 = arith.constant 0 : i32
    return %c0_i32, %c0_i32_0 : i32, i32
  }
  func.func @transform_3(%arg0: i32) -> (i32, i32) {
    %c0_i32 = arith.constant 0 : i32
    %c0_i32_0 = arith.constant 0 : i32
    %c0_i32_1 = arith.constant 0 : i32
    return %c0_i32, %c0_i32_0 : i32, i32
  }
  func.func @transform_4(%arg0: i32) -> (i32, i32) {
    %c0_i32 = arith.constant 0 : i32
    %c0_i32_0 = arith.constant 0 : i32
    %c0_i32_1 = arith.constant 0 : i32
    return %c0_i32, %c0_i32_0 : i32, i32
  }
  func.func @transform_5(%arg0: i32) -> (i32, i32) {
    %c0_i32 = arith.constant 0 : i32
    %c0_i32_0 = arith.constant 0 : i32
    return %arg0, %c0_i32 : i32, i32
  }
  func.func @transform_6(%arg0: i32) -> (i32, i32) {
    %c0_i32 = arith.constant 0 : i32
    %c0_i32_0 = arith.constant 0 : i32
    return %arg0, %c0_i32 : i32, i32
  }
}

</mosaic_0001>

<llo_original>
// kernel: forward.1
$region0: #{forward.1}
  #allocation0 [shape = 'u32[]', space=smem, size = 0x4, offset = 0x4, fixed_abs, tag = 'smem constant byte address 0x4 - core index']
  #allocation1 [shape = 'u32[72,128]{1,0:T(1,128)}', space=vmem, size = 0x9000, scoped, tag = 'internal scratch']
  %s0 = inlined_call_operand.vmem [shape: f32[2,128], index: 0, kind: input, shape index: {}]
  %s1 = inlined_call_operand.vmem [shape: f32[128,32], index: 1, kind: input, shape index: {}]
  %s2 = inlined_call_operand.vmem [shape: f32[1,32], index: 2, kind: input, shape index: {}]
  %s3 = inlined_call_operand.vmem [shape: f32[32,128], index: 3, kind: input, shape index: {}]
  %s4 = inlined_call_operand.vmem [shape: f32[1,128], index: 4, kind: input, shape index: {}]
  %s5 = inlined_call_operand.vmem [shape: f32[2,256], index: 5, kind: output, shape index: {0}]
  %s6 = inlined_call_operand.vmem [shape: s32[2,128], index: 6, kind: output, shape index: {1}]
  %7 = xla_tuple %s5, %s6
  %s8 = sld [smem:[#allocation0]]
  $region38: #{forward.1} parent=0
    _
  %s10 = ssub.s32 1, %s8
  %s11 = scalar_select 0, %s10, %s8
  // Predicated region
  $region2: #{forward.1} parent=0 // pred_check
    _
  $region3: #{forward.1} parent=0 // pred_check_branch
    %13 = sbr.rel (0) target = $region5
  $region4: #{forward.1} parent=0 // pred_region
    _
  $region5: #{forward.1} parent=0 // pred_fallthru
    _
  // Predicated region
  $region6: #{forward.1} parent=0 // pred_check
    _
  $region7: #{forward.1} parent=0 // pred_check_branch
    %15 = sbr.rel (0) target = $region9
  $region8: #{forward.1} parent=0 // pred_region
    _
  $region9: #{forward.1} parent=0 // pred_fallthru
    _
  // Predicated region
  $region10: #{forward.1} parent=0 // pred_check
    _
  $region11: #{forward.1} parent=0 // pred_check_branch
    %17 = sbr.rel (0) target = $region13
  $region12: #{forward.1} parent=0 // pred_region
    _
  $region13: #{forward.1} parent=0 // pred_fallthru
    _
  // Predicated region
  $region14: #{forward.1} parent=0 // pred_check
    _
  $region15: #{forward.1} parent=0 // pred_check_branch
    %19 = sbr.rel (0) target = $region17
  $region16: #{forward.1} parent=0 // pred_region
    _
  $region17: #{forward.1} parent=0 // pred_fallthru
    _
  // Predicated region
  $region18: #{forward.1} parent=0 // pred_check
    _
  $region19: #{forward.1} parent=0 // pred_check_branch
    %21 = sbr.rel (0) target = $region21
  $region20: #{forward.1} parent=0 // pred_region
    _
  $region21: #{forward.1} parent=0 // pred_fallthru
    _
  %22 = vst [vmem:[%s5] sm:$0xf] 0.0
  %23 = vst [vmem:[%s6] sm:$0x3] 0
  %v24 = vld [vmem:[%s0] sm:$0x3]
  %v25 = vld [vmem:[%s1] sm:$0xff]
  %v26 = vld [vmem:[%s1 + $0x8] sm:$0xff]
  %v27 = vld [vmem:[%s1 + $0x10] sm:$0xff]
  %v28 = vld [vmem:[%s1 + $0x18] sm:$0xff]
  %v29 = vld [vmem:[%s1 + $0x20] sm:$0xff]
  %v30 = vld [vmem:[%s1 + $0x28] sm:$0xff]
  %v31 = vld [vmem:[%s1 + $0x30] sm:$0xff]
  %v32 = vld [vmem:[%s1 + $0x38] sm:$0xff]
  %v33 = vld [vmem:[%s1 + $0x40] sm:$0xff]
  %v34 = vld [vmem:[%s1 + $0x48] sm:$0xff]
  %v35 = vld [vmem:[%s1 + $0x50] sm:$0xff]
  %v36 = vld [vmem:[%s1 + $0x58] sm:$0xff]
  %v37 = vld [vmem:[%s1 + $0x60] sm:$0xff]
  %v38 = vld [vmem:[%s1 + $0x68] sm:$0xff]
  %v39 = vld [vmem:[%s1 + $0x70] sm:$0xff]
  %v40 = vld [vmem:[%s1 + $0x78] sm:$0xff]
  %v41 = vld [vmem:[%s2] sm:$0x1]
  %v43 = vperm.slane %v41, 0
  %45 = vmatpush.msra.mxu0 %v40
  %46 = vmatpush.msra.mxu0 %v39
  %47 = vmatpush.msra.mxu0 %v38
  %48 = vmatpush.msra.mxu0 %v37
  %49 = vmatpush.msra.mxu0 %v36
  %50 = vmatpush.msra.mxu0 %v35
  %51 = vmatpush.msra.mxu0 %v34
  %52 = vmatpush.msra.mxu0 %v33
  %53 = vmatpush.msra.mxu0 %v32
  %54 = vmatpush.msra.mxu0 %v31
  %55 = vmatpush.msra.mxu0 %v30
  %56 = vmatpush.msra.mxu0 %v29
  %57 = vmatpush.msra.mxu0 %v28
  %58 = vmatpush.msra.mxu0 %v27
  %59 = vmatpush.msra.mxu0 %v26
  %60 = vmatpush.msra.mxu0 %v25
  %61 = vmatmul.f32.gmra.mxu0 %v24
  %v62 = vpop.f32.mrf.mxu0
  %v63 = vadd.f32 %v43, %v62
  %64 = vdwg.mxu0
  %vm65 = vcmp.ge.f32.partialorder %v63, 0.0
  %v66 = vmul.f32 %v63, 0.01
  %v67 = vsel %vm65, %v63, %v66
  %vm68 = vcmask 254976
  %69 = vst.msk [vmem:[%s5] sm:$0x3] %vm68, %v67
  %v70 = vld [vmem:[%s3] sm:$0xff]
  %v71 = vld [vmem:[%s3 + $0x8] sm:$0xff]
  %v72 = vld [vmem:[%s3 + $0x10] sm:$0xff]
  %v73 = vld [vmem:[%s3 + $0x18] sm:$0xff]
  %v74 = vld [vmem:[%s4] sm:$0x1]
  %v76 = vperm.slane %v74, 0
  %vm78 = vcmask 261120
  %v80 = vsel %vm78, %v67, 0
  %82 = vmatpush.msra.mxu0 0.0
  %83 = vmatpush.msra.mxu0 0.0
  %84 = vmatpush.msra.mxu0 0.0
  %85 = vmatpush.msra.mxu0 0.0
  %86 = vmatpush.msra.mxu0 0.0
  %87 = vmatpush.msra.mxu0 0.0
  %88 = vmatpush.msra.mxu0 0.0
  %89 = vmatpush.msra.mxu0 0.0
  %90 = vmatpush.msra.mxu0 0.0
  %91 = vmatpush.msra.mxu0 0.0
  %92 = vmatpush.msra.mxu0 0.0
  %93 = vmatpush.msra.mxu0 0.0
  %94 = vmatpush.msra.mxu0 %v73
  %95 = vmatpush.msra.mxu0 %v72
  %96 = vmatpush.msra.mxu0 %v71
  %97 = vmatpush.msra.mxu0 %v70
  %98 = vmatmul.f32.gmra.mxu0 %v80
  %v99 = vpop.f32.mrf.mxu0
  %v100 = vadd.f32 %v76, %v99
  %101 = vdwg.mxu0
  %vm102 = vcmask 41984
  %v103 = vsel %vm102, %v100, -inf
  %104 = vmax.xlane.f32.xlu0 %v103
  %v105 = vpop.xlane.xlu0 %104
  %v106 = vsub.f32 %v100, %v105
  %v107 = vmul.f32 %v106, 1.442695
  %v108 = vpow.pop %v107
  %v109 = vsel %vm102, %v108, 0.0
  %110 = vadd.xlane.f32.xlu0 %v109
  %v111 = vpop.xlane.xlu0 %110
  %v112 = vlog2.pop %v111
  %v113 = vmul.f32 %v112, 0.6931472
  %v114 = vadd.f32 %v105, %v113
  %v115 = vsub.f32 %v100, %v114
  %117 = vrot.lane.b32.xlu0 %v115, 32
  %v118 = vpop.permute.xlu0 %117
  %vm120 = vcmask 304384
  %121 = vst.msk [vmem:[%s5] sm:$0x3] %vm120, %v118
  %vm122 = vcmask 74800
  %v123 = vsel %vm122, %v100, -inf
  %124 = vmax.xlane.f32.xlu0 %v123
  %v125 = vpop.xlane.xlu0 %124
  %v126 = vsub.f32 %v100, %v125
  %v127 = vmul.f32 %v126, 1.442695
  %v128 = vpow.pop %v127
  %130 = vrot.lane.b32.xlu0 %v128, 122
  %v131 = vpop.permute.xlu0 %130
  %vm133 = vcmask 25600
  %v134 = vsel %vm133, %v131, 0.0
  %135 = vadd.xlane.f32.xlu0 %v134
  %v136 = vpop.xlane.xlu0 %135
  %v137 = vlog2.pop %v136
  %v138 = vmul.f32 %v137, 0.6931472
  %v139 = vadd.f32 %v125, %v138
  %v140 = vsub.f32 %v100, %v139
  %142 = vrot.lane.b32.xlu0 %v140, 32
  %v143 = vpop.permute.xlu0 %142
  %vm145 = vcmask 337200
  %146 = vst.msk [vmem:[%s5] sm:$0x3] %vm145, %v143
  %v147 = vsel %vm122, %v140, -inf
  %148 = vmax.xlane.f32.xlu0 %v147
  %v149 = vpop.xlane.xlu0 %148
  %v150 = vlaneseq
  %v151 = vand.u32 %v150, 127
  %vm152 = vcmp.eq.f32.partialorder %v140, %v149
  %153 = vrot.lane.b32.xlu0 %v151, 6
  %v154 = vpop.permute.xlu0 %153
  %v155 = vsel %vm152, %v154, 4
  %v156 = vsel %vm122, %v155, 2147483647
  %v157 = vand.u32 %v156, 65535
  %v158 = vshra.s32 %v156, 16
  %v159 = vcvt.s32.f32 %v157
  %v160 = vcvt.s32.f32 %v158
  %161 = vmin.xlane.f32.xlu0 %v160
  %v162 = vpop.xlane.xlu0 %161
  %vm163 = vcmp.eq.f32.partialorder %v160, %v162
  %v164 = vsel %vm163, %v159, inf
  %165 = vmin.xlane.f32.xlu0 %v164
  %v166 = vpop.xlane.xlu0 %165
  %v167 = vcvt.f32.s32 %v166
  %v168 = vcvt.f32.s32 %v162
  %v169 = vshll.u32 %v168, 16
  %v170 = vadd.s32 %v169, %v167
  %v171 = vsub.f32 %v140, %v149
  %v172 = vmul.f32 %v171, 1.442695
  %v173 = vpow.pop %v172
  %175 = vrot.lane.b32.xlu0 %v173, 122
  %v176 = vpop.permute.xlu0 %175
  %v178 = vsel %vm133, %v176, 0.0
  %179 = vadd.xlane.f32.xlu0 %v178
  %v180 = vpop.xlane.xlu0 %179
  %v181 = vlog2.pop %v180
  %v182 = vmul.f32 %v181, 0.6931472
  %v183 = vadd.f32 %v149, %v182
  %vm184 = vcmask 107600
  %v185 = vsel %vm184, %v100, -inf
  %186 = vmax.xlane.f32.xlu0 %v185
  %v187 = vpop.xlane.xlu0 %186
  %v188 = vsub.f32 %v100, %v187
  %v189 = vmul.f32 %v188, 1.442695
  %v190 = vpow.pop %v189
  %192 = vrot.lane.b32.xlu0 %v190, 118
  %v193 = vpop.permute.xlu0 %192
  %v195 = vsel %vm133, %v193, 0.0
  %196 = vadd.xlane.f32.xlu0 %v195
  %v197 = vpop.xlane.xlu0 %196
  %v198 = vlog2.pop %v197
  %v199 = vmul.f32 %v198, 0.6931472
  %v200 = vadd.f32 %v187, %v199
  %v201 = vsub.f32 %v100, %v200
  %203 = vrot.lane.b32.xlu0 %v201, 32
  %v204 = vpop.permute.xlu0 %203
  %vm206 = vcmask 370000
  %207 = vst.msk [vmem:[%s5] sm:$0x3] %vm206, %v204
  %v208 = vsel %vm184, %v201, -inf
  %209 = vmax.xlane.f32.xlu0 %v208
  %v210 = vpop.xlane.xlu0 %209
  %vm211 = vcmp.eq.f32.partialorder %v201, %v210
  %212 = vrot.lane.b32.xlu0 %v151, 10
  %v213 = vpop.permute.xlu0 %212
  %v214 = vsel %vm211, %v213, 4
  %v215 = vsel %vm184, %v214, 2147483647
  %v216 = vand.u32 %v215, 65535
  %v217 = vshra.s32 %v215, 16
  %v218 = vcvt.s32.f32 %v216
  %v219 = vcvt.s32.f32 %v217
  %220 = vmin.xlane.f32.xlu0 %v219
  %v221 = vpop.xlane.xlu0 %220
  %vm222 = vcmp.eq.f32.partialorder %v219, %v221
  %v223 = vsel %vm222, %v218, inf
  %224 = vmin.xlane.f32.xlu0 %v223
  %v225 = vpop.xlane.xlu0 %224
  %v226 = vcvt.f32.s32 %v225
  %v227 = vcvt.f32.s32 %v221
  %v228 = vshll.u32 %v227, 16
  %v229 = vadd.s32 %v228, %v226
  %v230 = vsub.f32 %v201, %v210
  %v231 = vmul.f32 %v230, 1.442695
  %v232 = vpow.pop %v231
  %234 = vrot.lane.b32.xlu0 %v232, 118
  %v235 = vpop.permute.xlu0 %234
  %v237 = vsel %vm133, %v235, 0.0
  %238 = vadd.xlane.f32.xlu0 %v237
  %v239 = vpop.xlane.xlu0 %238
  %v240 = vlog2.pop %v239
  %v241 = vmul.f32 %v240, 0.6931472
  %v242 = vadd.f32 %v210, %v241
  %vm243 = vcmask 140400
  %v244 = vsel %vm243, %v100, -inf
  %245 = vmax.xlane.f32.xlu0 %v244
  %v246 = vpop.xlane.xlu0 %245
  %v247 = vsub.f32 %v100, %v246
  %v248 = vmul.f32 %v247, 1.442695
  %v249 = vpow.pop %v248
  %251 = vrot.lane.b32.xlu0 %v249, 114
  %v252 = vpop.permute.xlu0 %251
  %v254 = vsel %vm133, %v252, 0.0
  %255 = vadd.xlane.f32.xlu0 %v254
  %v256 = vpop.xlane.xlu0 %255
  %v257 = vlog2.pop %v256
  %v258 = vmul.f32 %v257, 0.6931472
  %v259 = vadd.f32 %v246, %v258
  %v260 = vsub.f32 %v100, %v259
  %262 = vrot.lane.b32.xlu0 %v260, 32
  %v263 = vpop.permute.xlu0 %262
  %vm265 = vcmask 402800
  %266 = vst.msk [vmem:[%s5] sm:$0x3] %vm265, %v263
  %v267 = vsel %vm243, %v260, -inf
  %268 = vmax.xlane.f32.xlu0 %v267
  %v269 = vpop.xlane.xlu0 %268
  %vm270 = vcmp.eq.f32.partialorder %v260, %v269
  %271 = vrot.lane.b32.xlu0 %v151, 14
  %v272 = vpop.permute.xlu0 %271
  %v273 = vsel %vm270, %v272, 4
  %v274 = vsel %vm243, %v273, 2147483647
  %v275 = vand.u32 %v274, 65535
  %v276 = vshra.s32 %v274, 16
  %v277 = vcvt.s32.f32 %v275
  %v278 = vcvt.s32.f32 %v276
  %279 = vmin.xlane.f32.xlu0 %v278
  %v280 = vpop.xlane.xlu0 %279
  %vm281 = vcmp.eq.f32.partialorder %v278, %v280
  %v282 = vsel %vm281, %v277, inf
  %283 = vmin.xlane.f32.xlu0 %v282
  %v284 = vpop.xlane.xlu0 %283
  %v285 = vcvt.f32.s32 %v284
  %v286 = vcvt.f32.s32 %v280
  %v287 = vshll.u32 %v286, 16
  %v288 = vadd.s32 %v287, %v285
  %v289 = vsub.f32 %v260, %v269
  %v290 = vmul.f32 %v289, 1.442695
  %v291 = vpow.pop %v290
  %293 = vrot.lane.b32.xlu0 %v291, 114
  %v294 = vpop.permute.xlu0 %293
  %v296 = vsel %vm133, %v294, 0.0
  %297 = vadd.xlane.f32.xlu0 %v296
  %v298 = vpop.xlane.xlu0 %297
  %v299 = vlog2.pop %v298
  %v300 = vmul.f32 %v299, 0.6931472
  %v301 = vadd.f32 %v269, %v300
  %vm302 = vcmask 173200
  %v303 = vsel %vm302, %v100, -inf
  %304 = vmax.xlane.f32.xlu0 %v303
  %v305 = vpop.xlane.xlu0 %304
  %v306 = vsub.f32 %v100, %v305
  %v307 = vmul.f32 %v306, 1.442695
  %v308 = vpow.pop %v307
  %310 = vrot.lane.b32.xlu0 %v308, 110
  %v311 = vpop.permute.xlu0 %310
  %v313 = vsel %vm133, %v311, 0.0
  %314 = vadd.xlane.f32.xlu0 %v313
  %v315 = vpop.xlane.xlu0 %314
  %v316 = vlog2.pop %v315
  %v317 = vmul.f32 %v316, 0.6931472
  %v318 = vadd.f32 %v305, %v317
  %v319 = vsub.f32 %v100, %v318
  %321 = vrot.lane.b32.xlu0 %v319, 32
  %v322 = vpop.permute.xlu0 %321
  %vm324 = vcmask 435600
  %325 = vst.msk [vmem:[%s5] sm:$0x3] %vm324, %v322
  %v326 = vsel %vm302, %v319, -inf
  %327 = vmax.xlane.f32.xlu0 %v326
  %v328 = vpop.xlane.xlu0 %327
  %vm329 = vcmp.eq.f32.partialorder %v319, %v328
  %330 = vrot.lane.b32.xlu0 %v151, 18
  %v331 = vpop.permute.xlu0 %330
  %v332 = vsel %vm329, %v331, 4
  %v333 = vsel %vm302, %v332, 2147483647
  %v334 = vand.u32 %v333, 65535
  %v335 = vshra.s32 %v333, 16
  %v336 = vcvt.s32.f32 %v334
  %v337 = vcvt.s32.f32 %v335
  %338 = vmin.xlane.f32.xlu0 %v337
  %v339 = vpop.xlane.xlu0 %338
  %vm340 = vcmp.eq.f32.partialorder %v337, %v339
  %v341 = vsel %vm340, %v336, inf
  %342 = vmin.xlane.f32.xlu0 %v341
  %v343 = vpop.xlane.xlu0 %342
  %v344 = vcvt.f32.s32 %v343
  %v345 = vcvt.f32.s32 %v339
  %v346 = vshll.u32 %v345, 16
  %v347 = vadd.s32 %v346, %v344
  %v348 = vsub.f32 %v319, %v328
  %v349 = vmul.f32 %v348, 1.442695
  %v350 = vpow.pop %v349
  %352 = vrot.lane.b32.xlu0 %v350, 110
  %v353 = vpop.permute.xlu0 %352
  %v355 = vsel %vm133, %v353, 0.0
  %356 = vadd.xlane.f32.xlu0 %v355
  %v357 = vpop.xlane.xlu0 %356
  %v358 = vlog2.pop %v357
  %v359 = vmul.f32 %v358, 0.6931472
  %v360 = vadd.f32 %v328, %v359
  %vm361 = vcmask 206000
  %v362 = vsel %vm361, %v100, -inf
  %363 = vmax.xlane.f32.xlu0 %v362
  %v364 = vpop.xlane.xlu0 %363
  %v365 = vsub.f32 %v100, %v364
  %v366 = vmul.f32 %v365, 1.442695
  %v367 = vpow.pop %v366
  %369 = vrot.lane.b32.xlu0 %v367, 106
  %v370 = vpop.permute.xlu0 %369
  %v372 = vsel %vm133, %v370, 0.0
  %373 = vadd.xlane.f32.xlu0 %v372
  %v374 = vpop.xlane.xlu0 %373
  %v375 = vlog2.pop %v374
  %v376 = vmul.f32 %v375, 0.6931472
  %v377 = vadd.f32 %v364, %v376
  %v378 = vsub.f32 %v100, %v377
  %380 = vrot.lane.b32.xlu0 %v378, 32
  %v381 = vpop.permute.xlu0 %380
  %vm383 = vcmask 468400
  %384 = vst.msk [vmem:[%s5] sm:$0x3] %vm383, %v381
  %v385 = vsel %vm361, %v378, -inf
  %386 = vmax.xlane.f32.xlu0 %v385
  %v387 = vpop.xlane.xlu0 %386
  %vm388 = vcmp.eq.f32.partialorder %v378, %v387
  %389 = vrot.lane.b32.xlu0 %v151, 22
  %v390 = vpop.permute.xlu0 %389
  %v391 = vsel %vm388, %v390, 4
  %v392 = vsel %vm361, %v391, 2147483647
  %v393 = vand.u32 %v392, 65535
  %v394 = vshra.s32 %v392, 16
  %v395 = vcvt.s32.f32 %v393
  %v396 = vcvt.s32.f32 %v394
  %397 = vmin.xlane.f32.xlu0 %v396
  %v398 = vpop.xlane.xlu0 %397
  %vm399 = vcmp.eq.f32.partialorder %v396, %v398
  %v400 = vsel %vm399, %v395, inf
  %401 = vmin.xlane.f32.xlu0 %v400
  %v402 = vpop.xlane.xlu0 %401
  %v403 = vcvt.f32.s32 %v402
  %v404 = vcvt.f32.s32 %v398
  %v405 = vshll.u32 %v404, 16
  %v406 = vadd.s32 %v405, %v403
  %v407 = vsub.f32 %v378, %v387
  %v408 = vmul.f32 %v407, 1.442695
  %v409 = vpow.pop %v408
  %411 = vrot.lane.b32.xlu0 %v409, 106
  %v412 = vpop.permute.xlu0 %411
  %v414 = vsel %vm133, %v412, 0.0
  %415 = vadd.xlane.f32.xlu0 %v414
  %v416 = vpop.xlane.xlu0 %415
  %v417 = vlog2.pop %v416
  %v418 = vmul.f32 %v417, 0.6931472
  %v419 = vadd.f32 %v387, %v418
  %vm420 = vcmask 238800
  %v421 = vsel %vm420, %v100, -inf
  %422 = vmax.xlane.f32.xlu0 %v421
  %v423 = vpop.xlane.xlu0 %422
  %v424 = vsub.f32 %v100, %v423
  %v425 = vmul.f32 %v424, 1.442695
  %v426 = vpow.pop %v425
  %428 = vrot.lane.b32.xlu0 %v426, 102
  %v429 = vpop.permute.xlu0 %428
  %v431 = vsel %vm133, %v429, 0.0
  %432 = vadd.xlane.f32.xlu0 %v431
  %v433 = vpop.xlane.xlu0 %432
  %v434 = vlog2.pop %v433
  %v435 = vmul.f32 %v434, 0.6931472
  %v436 = vadd.f32 %v423, %v435
  %v437 = vsub.f32 %v100, %v436
  %439 = vrot.lane.b32.xlu0 %v437, 32
  %v440 = vpop.permute.xlu0 %439
  %vm442 = vcmask 501200
  %443 = vst.msk [vmem:[%s5] sm:$0x3] %vm442, %v440
  %v444 = vsel %vm420, %v437, -inf
  %445 = vmax.xlane.f32.xlu0 %v444
  %v446 = vpop.xlane.xlu0 %445
  %vm447 = vcmp.eq.f32.partialorder %v437, %v446
  %448 = vrot.lane.b32.xlu0 %v151, 26
  %v449 = vpop.permute.xlu0 %448
  %v450 = vsel %vm447, %v449, 4
  %v451 = vsel %vm420, %v450, 2147483647
  %v452 = vand.u32 %v451, 65535
  %v453 = vshra.s32 %v451, 16
  %v454 = vcvt.s32.f32 %v452
  %v455 = vcvt.s32.f32 %v453
  %456 = vmin.xlane.f32.xlu0 %v455
  %v457 = vpop.xlane.xlu0 %456
  %vm458 = vcmp.eq.f32.partialorder %v455, %v457
  %v459 = vsel %vm458, %v454, inf
  %460 = vmin.xlane.f32.xlu0 %v459
  %v461 = vpop.xlane.xlu0 %460
  %v462 = vcvt.f32.s32 %v461
  %v463 = vcvt.f32.s32 %v457
  %v464 = vshll.u32 %v463, 16
  %v465 = vadd.s32 %v464, %v462
  %v466 = vsub.f32 %v437, %v446
  %v467 = vmul.f32 %v466, 1.442695
  %v468 = vpow.pop %v467
  %470 = vrot.lane.b32.xlu0 %v468, 102
  %v471 = vpop.permute.xlu0 %470
  %v473 = vsel %vm133, %v471, 0.0
  %474 = vadd.xlane.f32.xlu0 %v473
  %v475 = vpop.xlane.xlu0 %474
  %v476 = vlog2.pop %v475
  %v477 = vmul.f32 %v476, 0.6931472
  %v478 = vadd.f32 %v446, %v477
  %vm479 = vcmask 304368
  %v480 = vsel %vm479, %v100, -inf
  %481 = vmax.xlane.f32.xlu0 %v480
  %v482 = vpop.xlane.xlu0 %481
  %v483 = vsub.f32 %v100, %v482
  %v484 = vmul.f32 %v483, 1.442695
  %v485 = vpow.pop %v484
  %487 = vrot.lane.b32.xlu0 %v485, 98
  %v488 = vpop.permute.xlu0 %487
  %vm490 = vcmask 58368
  %v491 = vsel %vm490, %v488, 0.0
  %492 = vadd.xlane.f32.xlu0 %v491
  %v493 = vpop.xlane.xlu0 %492
  %v494 = vlog2.pop %v493
  %v495 = vmul.f32 %v494, 0.6931472
  %v496 = vadd.f32 %v482, %v495
  %v497 = vsub.f32 %v100, %v496
  %499 = vrot.lane.b32.xlu0 %v497, 32
  %v500 = vpop.permute.xlu0 %499
  %vm502 = vcmask 566768
  %503 = vst.msk [vmem:[%s5] sm:$0x3] %vm502, %v500
  %v504 = vsel %vm479, %v497, -inf
  %505 = vmax.xlane.f32.xlu0 %v504
  %v506 = vpop.xlane.xlu0 %505
  %vm507 = vcmp.eq.f32.partialorder %v497, %v506
  %508 = vrot.lane.b32.xlu0 %v151, 30
  %v509 = vpop.permute.xlu0 %508
  %v510 = vsel %vm507, %v509, 8
  %v511 = vsel %vm479, %v510, 2147483647
  %v512 = vand.u32 %v511, 65535
  %v513 = vshra.s32 %v511, 16
  %v514 = vcvt.s32.f32 %v512
  %v515 = vcvt.s32.f32 %v513
  %516 = vmin.xlane.f32.xlu0 %v515
  %v517 = vpop.xlane.xlu0 %516
  %vm518 = vcmp.eq.f32.partialorder %v515, %v517
  %v519 = vsel %vm518, %v514, inf
  %520 = vmin.xlane.f32.xlu0 %v519
  %v521 = vpop.xlane.xlu0 %520
  %v522 = vcvt.f32.s32 %v521
  %v523 = vcvt.f32.s32 %v517
  %v524 = vshll.u32 %v523, 16
  %v525 = vadd.s32 %v524, %v522
  %v526 = vsub.f32 %v497, %v506
  %v527 = vmul.f32 %v526, 1.442695
  %v528 = vpow.pop %v527
  %530 = vrot.lane.b32.xlu0 %v528, 98
  %v531 = vpop.permute.xlu0 %530
  %v533 = vsel %vm490, %v531, 0.0
  %534 = vadd.xlane.f32.xlu0 %v533
  %v535 = vpop.xlane.xlu0 %534
  %v536 = vlog2.pop %v535
  %v537 = vmul.f32 %v536, 0.6931472
  %v538 = vadd.f32 %v506, %v537
  %vm539 = vcmask 369968
  %v540 = vsel %vm539, %v100, -inf
  %541 = vmax.xlane.f32.xlu0 %v540
  %v542 = vpop.xlane.xlu0 %541
  %v543 = vsub.f32 %v100, %v542
  %v544 = vmul.f32 %v543, 1.442695
  %v545 = vpow.pop %v544
  %547 = vrot.lane.b32.xlu0 %v545, 90
  %v548 = vpop.permute.xlu0 %547
  %v550 = vsel %vm490, %v548, 0.0
  %551 = vadd.xlane.f32.xlu0 %v550
  %v552 = vpop.xlane.xlu0 %551
  %v553 = vlog2.pop %v552
  %v554 = vmul.f32 %v553, 0.6931472
  %v555 = vadd.f32 %v542, %v554
  %v556 = vsub.f32 %v100, %v555
  %558 = vrot.lane.b32.xlu0 %v556, 32
  %v559 = vpop.permute.xlu0 %558
  %vm561 = vcmask 632368
  %562 = vst.msk [vmem:[%s5] sm:$0x3] %vm561, %v559
  %v563 = vsel %vm539, %v556, -inf
  %564 = vmax.xlane.f32.xlu0 %v563
  %v565 = vpop.xlane.xlu0 %564
  %vm566 = vcmp.eq.f32.partialorder %v556, %v565
  %567 = vrot.lane.b32.xlu0 %v151, 38
  %v568 = vpop.permute.xlu0 %567
  %v569 = vsel %vm566, %v568, 8
  %v570 = vsel %vm539, %v569, 2147483647
  %v571 = vand.u32 %v570, 65535
  %v572 = vshra.s32 %v570, 16
  %v573 = vcvt.s32.f32 %v571
  %v574 = vcvt.s32.f32 %v572
  %575 = vmin.xlane.f32.xlu0 %v574
  %v576 = vpop.xlane.xlu0 %575
  %vm577 = vcmp.eq.f32.partialorder %v574, %v576
  %v578 = vsel %vm577, %v573, inf
  %579 = vmin.xlane.f32.xlu0 %v578
  %v580 = vpop.xlane.xlu0 %579
  %v581 = vcvt.f32.s32 %v580
  %v582 = vcvt.f32.s32 %v576
  %v583 = vshll.u32 %v582, 16
  %v584 = vadd.s32 %v583, %v581
  %v585 = vsub.f32 %v556, %v565
  %v586 = vmul.f32 %v585, 1.442695
  %v587 = vpow.pop %v586
  %589 = vrot.lane.b32.xlu0 %v587, 90
  %v590 = vpop.permute.xlu0 %589
  %v592 = vsel %vm490, %v590, 0.0
  %593 = vadd.xlane.f32.xlu0 %v592
  %v594 = vpop.xlane.xlu0 %593
  %v595 = vlog2.pop %v594
  %v596 = vmul.f32 %v595, 0.6931472
  %v597 = vadd.f32 %v565, %v596
  %vm598 = vcmask 435568
  %v599 = vsel %vm598, %v100, -inf
  %600 = vmax.xlane.f32.xlu0 %v599
  %v601 = vpop.xlane.xlu0 %600
  %v602 = vsub.f32 %v100, %v601
  %v603 = vmul.f32 %v602, 1.442695
  %v604 = vpow.pop %v603
  %606 = vrot.lane.b32.xlu0 %v604, 82
  %v607 = vpop.permute.xlu0 %606
  %v609 = vsel %vm490, %v607, 0.0
  %610 = vadd.xlane.f32.xlu0 %v609
  %v611 = vpop.xlane.xlu0 %610
  %v612 = vlog2.pop %v611
  %v613 = vmul.f32 %v612, 0.6931472
  %v614 = vadd.f32 %v601, %v613
  %v615 = vsub.f32 %v100, %v614
  %617 = vrot.lane.b32.xlu0 %v615, 32
  %v618 = vpop.permute.xlu0 %617
  %vm620 = vcmask 697968
  %621 = vst.msk [vmem:[%s5] sm:$0x3] %vm620, %v618
  %v622 = vsel %vm598, %v615, -inf
  %623 = vmax.xlane.f32.xlu0 %v622
  %v624 = vpop.xlane.xlu0 %623
  %vm625 = vcmp.eq.f32.partialorder %v615, %v624
  %626 = vrot.lane.b32.xlu0 %v151, 46
  %v627 = vpop.permute.xlu0 %626
  %v628 = vsel %vm625, %v627, 8
  %v629 = vsel %vm598, %v628, 2147483647
  %v630 = vand.u32 %v629, 65535
  %v631 = vshra.s32 %v629, 16
  %v632 = vcvt.s32.f32 %v630
  %v633 = vcvt.s32.f32 %v631
  %634 = vmin.xlane.f32.xlu0 %v633
  %v635 = vpop.xlane.xlu0 %634
  %vm636 = vcmp.eq.f32.partialorder %v633, %v635
  %v637 = vsel %vm636, %v632, inf
  %638 = vmin.xlane.f32.xlu0 %v637
  %v639 = vpop.xlane.xlu0 %638
  %v640 = vcvt.f32.s32 %v639
  %v641 = vcvt.f32.s32 %v635
  %v642 = vshll.u32 %v641, 16
  %v643 = vadd.s32 %v642, %v640
  %v644 = vsub.f32 %v615, %v624
  %v645 = vmul.f32 %v644, 1.442695
  %v646 = vpow.pop %v645
  %648 = vrot.lane.b32.xlu0 %v646, 82
  %v649 = vpop.permute.xlu0 %648
  %v651 = vsel %vm490, %v649, 0.0
  %652 = vadd.xlane.f32.xlu0 %v651
  %v653 = vpop.xlane.xlu0 %652
  %v654 = vlog2.pop %v653
  %v655 = vmul.f32 %v654, 0.6931472
  %v656 = vadd.f32 %v624, %v655
  %vm657 = vcmask 501168
  %v658 = vsel %vm657, %v100, -inf
  %659 = vmax.xlane.f32.xlu0 %v658
  %v660 = vpop.xlane.xlu0 %659
  %v661 = vsub.f32 %v100, %v660
  %v662 = vmul.f32 %v661, 1.442695
  %v663 = vpow.pop %v662
  %665 = vrot.lane.b32.xlu0 %v663, 74
  %v666 = vpop.permute.xlu0 %665
  %v668 = vsel %vm490, %v666, 0.0
  %669 = vadd.xlane.f32.xlu0 %v668
  %v670 = vpop.xlane.xlu0 %669
  %v671 = vlog2.pop %v670
  %v672 = vmul.f32 %v671, 0.6931472
  %v673 = vadd.f32 %v660, %v672
  %v674 = vsub.f32 %v100, %v673
  %676 = vrot.lane.b32.xlu0 %v674, 32
  %v677 = vpop.permute.xlu0 %676
  %vm679 = vcmask 763568
  %680 = vst.msk [vmem:[%s5] sm:$0x3] %vm679, %v677
  %v681 = vsel %vm657, %v674, -inf
  %682 = vmax.xlane.f32.xlu0 %v681
  %v683 = vpop.xlane.xlu0 %682
  %vm684 = vcmp.eq.f32.partialorder %v674, %v683
  %685 = vrot.lane.b32.xlu0 %v151, 54
  %v686 = vpop.permute.xlu0 %685
  %v687 = vsel %vm684, %v686, 8
  %v688 = vsel %vm657, %v687, 2147483647
  %v689 = vand.u32 %v688, 65535
  %v690 = vshra.s32 %v688, 16
  %v691 = vcvt.s32.f32 %v689
  %v692 = vcvt.s32.f32 %v690
  %693 = vmin.xlane.f32.xlu0 %v692
  %v694 = vpop.xlane.xlu0 %693
  %vm695 = vcmp.eq.f32.partialorder %v692, %v694
  %v696 = vsel %vm695, %v691, inf
  %697 = vmin.xlane.f32.xlu0 %v696
  %v698 = vpop.xlane.xlu0 %697
  %v699 = vcvt.f32.s32 %v698
  %v700 = vcvt.f32.s32 %v694
  %v701 = vshll.u32 %v700, 16
  %v702 = vadd.s32 %v701, %v699
  %v703 = vsub.f32 %v674, %v683
  %v704 = vmul.f32 %v703, 1.442695
  %v705 = vpow.pop %v704
  %707 = vrot.lane.b32.xlu0 %v705, 74
  %v708 = vpop.permute.xlu0 %707
  %v710 = vsel %vm490, %v708, 0.0
  %711 = vadd.xlane.f32.xlu0 %v710
  %v712 = vpop.xlane.xlu0 %711
  %v713 = vlog2.pop %v712
  %v714 = vmul.f32 %v713, 0.6931472
  %v715 = vadd.f32 %v683, %v714
  %v716 = vsel %vm502, %v100, -inf
  %717 = vmax.xlane.f32.xlu0 %v716
  %v718 = vpop.xlane.xlu0 %717
  %v719 = vsub.f32 %v100, %v718
  %v720 = vmul.f32 %v719, 1.442695
  %v721 = vpow.pop %v720
  %723 = vrot.lane.b32.xlu0 %v721, 66
  %v724 = vpop.permute.xlu0 %723
  %v726 = vsel %vm490, %v724, 0.0
  %727 = vadd.xlane.f32.xlu0 %v726
  %v728 = vpop.xlane.xlu0 %727
  %v729 = vlog2.pop %v728
  %v730 = vmul.f32 %v729, 0.6931472
  %v731 = vadd.f32 %v718, %v730
  %v732 = vsub.f32 %v100, %v731
  %734 = vrot.lane.b32.xlu0 %v732, 32
  %v735 = vpop.permute.xlu0 %734
  %vm737 = vcmask 829168
  %738 = vst.msk [vmem:[%s5] sm:$0x3] %vm737, %v735
  %v739 = vsel %vm502, %v732, -inf
  %740 = vmax.xlane.f32.xlu0 %v739
  %v741 = vpop.xlane.xlu0 %740
  %vm742 = vcmp.eq.f32.partialorder %v732, %v741
  %743 = vrot.lane.b32.xlu0 %v151, 62
  %v744 = vpop.permute.xlu0 %743
  %v745 = vsel %vm742, %v744, 8
  %v746 = vsel %vm502, %v745, 2147483647
  %v747 = vand.u32 %v746, 65535
  %v748 = vshra.s32 %v746, 16
  %v749 = vcvt.s32.f32 %v747
  %v750 = vcvt.s32.f32 %v748
  %751 = vmin.xlane.f32.xlu0 %v750
  %v752 = vpop.xlane.xlu0 %751
  %vm753 = vcmp.eq.f32.partialorder %v750, %v752
  %v754 = vsel %vm753, %v749, inf
  %755 = vmin.xlane.f32.xlu0 %v754
  %v756 = vpop.xlane.xlu0 %755
  %v757 = vcvt.f32.s32 %v756
  %v758 = vcvt.f32.s32 %v752
  %v759 = vshll.u32 %v758, 16
  %v760 = vadd.s32 %v759, %v757
  %v761 = vsub.f32 %v732, %v741
  %v762 = vmul.f32 %v761, 1.442695
  %v763 = vpow.pop %v762
  %765 = vrot.lane.b32.xlu0 %v763, 66
  %v766 = vpop.permute.xlu0 %765
  %v768 = vsel %vm490, %v766, 0.0
  %769 = vadd.xlane.f32.xlu0 %v768
  %v770 = vpop.xlane.xlu0 %769
  %v771 = vlog2.pop %v770
  %v772 = vmul.f32 %v771, 0.6931472
  %v773 = vadd.f32 %v741, %v772
  %v774 = vsel %vm561, %v100, -inf
  %775 = vmax.xlane.f32.xlu0 %v774
  %v776 = vpop.xlane.xlu0 %775
  %v777 = vsub.f32 %v100, %v776
  %v778 = vmul.f32 %v777, 1.442695
  %v779 = vpow.pop %v778
  %781 = vrot.lane.b32.xlu0 %v779, 58
  %v782 = vpop.permute.xlu0 %781
  %v784 = vsel %vm490, %v782, 0.0
  %785 = vadd.xlane.f32.xlu0 %v784
  %v786 = vpop.xlane.xlu0 %785
  %v787 = vlog2.pop %v786
  %v788 = vmul.f32 %v787, 0.6931472
  %v789 = vadd.f32 %v776, %v788
  %v790 = vsub.f32 %v100, %v789
  %792 = vrot.lane.b32.xlu0 %v790, 32
  %v793 = vpop.permute.xlu0 %792
  %vm795 = vcmask 894768
  %796 = vst.msk [vmem:[%s5] sm:$0x3] %vm795, %v793
  %v797 = vsel %vm561, %v790, -inf
  %798 = vmax.xlane.f32.xlu0 %v797
  %v799 = vpop.xlane.xlu0 %798
  %vm800 = vcmp.eq.f32.partialorder %v790, %v799
  %801 = vrot.lane.b32.xlu0 %v151, 70
  %v802 = vpop.permute.xlu0 %801
  %v803 = vsel %vm800, %v802, 8
  %v804 = vsel %vm561, %v803, 2147483647
  %v805 = vand.u32 %v804, 65535
  %v806 = vshra.s32 %v804, 16
  %v807 = vcvt.s32.f32 %v805
  %v808 = vcvt.s32.f32 %v806
  %809 = vmin.xlane.f32.xlu0 %v808
  %v810 = vpop.xlane.xlu0 %809
  %vm811 = vcmp.eq.f32.partialorder %v808, %v810
  %v812 = vsel %vm811, %v807, inf
  %813 = vmin.xlane.f32.xlu0 %v812
  %v814 = vpop.xlane.xlu0 %813
  %v815 = vcvt.f32.s32 %v814
  %v816 = vcvt.f32.s32 %v810
  %v817 = vshll.u32 %v816, 16
  %v818 = vadd.s32 %v817, %v815
  %v819 = vsub.f32 %v790, %v799
  %v820 = vmul.f32 %v819, 1.442695
  %v821 = vpow.pop %v820
  %823 = vrot.lane.b32.xlu0 %v821, 58
  %v824 = vpop.permute.xlu0 %823
  %v826 = vsel %vm490, %v824, 0.0
  %827 = vadd.xlane.f32.xlu0 %v826
  %v828 = vpop.xlane.xlu0 %827
  %v829 = vlog2.pop %v828
  %v830 = vmul.f32 %v829, 0.6931472
  %v831 = vadd.f32 %v799, %v830
  %v832 = vsel %vm620, %v100, -inf
  %833 = vmax.xlane.f32.xlu0 %v832
  %v834 = vpop.xlane.xlu0 %833
  %v835 = vsub.f32 %v100, %v834
  %v836 = vmul.f32 %v835, 1.442695
  %v837 = vpow.pop %v836
  %839 = vrot.lane.b32.xlu0 %v837, 50
  %v840 = vpop.permute.xlu0 %839
  %v842 = vsel %vm490, %v840, 0.0
  %843 = vadd.xlane.f32.xlu0 %v842
  %v844 = vpop.xlane.xlu0 %843
  %v845 = vlog2.pop %v844
  %v846 = vmul.f32 %v845, 0.6931472
  %v847 = vadd.f32 %v834, %v846
  %v848 = vsub.f32 %v100, %v847
  %850 = vrot.lane.b32.xlu0 %v848, 32
  %v851 = vpop.permute.xlu0 %850
  %vm853 = vcmask 960368
  %854 = vst.msk [vmem:[%s5] sm:$0x3] %vm853, %v851
  %v855 = vsel %vm620, %v848, -inf
  %856 = vmax.xlane.f32.xlu0 %v855
  %v857 = vpop.xlane.xlu0 %856
  %vm858 = vcmp.eq.f32.partialorder %v848, %v857
  %859 = vrot.lane.b32.xlu0 %v151, 78
  %v860 = vpop.permute.xlu0 %859
  %v861 = vsel %vm858, %v860, 8
  %v862 = vsel %vm620, %v861, 2147483647
  %v863 = vand.u32 %v862, 65535
  %v864 = vshra.s32 %v862, 16
  %v865 = vcvt.s32.f32 %v863
  %v866 = vcvt.s32.f32 %v864
  %867 = vmin.xlane.f32.xlu0 %v866
  %v868 = vpop.xlane.xlu0 %867
  %vm869 = vcmp.eq.f32.partialorder %v866, %v868
  %v870 = vsel %vm869, %v865, inf
  %871 = vmin.xlane.f32.xlu0 %v870
  %v872 = vpop.xlane.xlu0 %871
  %v873 = vcvt.f32.s32 %v872
  %v874 = vcvt.f32.s32 %v868
  %v875 = vshll.u32 %v874, 16
  %v876 = vadd.s32 %v875, %v873
  %v877 = vsub.f32 %v848, %v857
  %v878 = vmul.f32 %v877, 1.442695
  %v879 = vpow.pop %v878
  %881 = vrot.lane.b32.xlu0 %v879, 50
  %v882 = vpop.permute.xlu0 %881
  %v884 = vsel %vm490, %v882, 0.0
  %885 = vadd.xlane.f32.xlu0 %v884
  %v886 = vpop.xlane.xlu0 %885
  %v887 = vlog2.pop %v886
  %v888 = vmul.f32 %v887, 0.6931472
  %v889 = vadd.f32 %v857, %v888
  %v890 = vsel %vm679, %v100, -inf
  %891 = vmax.xlane.f32.xlu0 %v890
  %v892 = vpop.xlane.xlu0 %891
  %v893 = vsub.f32 %v100, %v892
  %v894 = vmul.f32 %v893, 1.442695
  %v895 = vpow.pop %v894
  %897 = vrot.lane.b32.xlu0 %v895, 42
  %v898 = vpop.permute.xlu0 %897
  %v900 = vsel %vm490, %v898, 0.0
  %901 = vadd.xlane.f32.xlu0 %v900
  %v902 = vpop.xlane.xlu0 %901
  %v903 = vlog2.pop %v902
  %v904 = vmul.f32 %v903, 0.6931472
  %v905 = vadd.f32 %v892, %v904
  %v906 = vsub.f32 %v100, %v905
  %908 = vrot.lane.b32.xlu0 %v906, 32
  %v909 = vpop.permute.xlu0 %908
  %vm911 = vcmask 1025968
  %912 = vst.msk [vmem:[%s5] sm:$0x3] %vm911, %v909
  %v913 = vsel %vm679, %v906, -inf
  %914 = vmax.xlane.f32.xlu0 %v913
  %v915 = vpop.xlane.xlu0 %914
  %vm916 = vcmp.eq.f32.partialorder %v906, %v915
  %917 = vrot.lane.b32.xlu0 %v151, 86
  %v918 = vpop.permute.xlu0 %917
  %v919 = vsel %vm916, %v918, 8
  %v920 = vsel %vm679, %v919, 2147483647
  %v921 = vand.u32 %v920, 65535
  %v922 = vshra.s32 %v920, 16
  %v923 = vcvt.s32.f32 %v921
  %v924 = vcvt.s32.f32 %v922
  %925 = vmin.xlane.f32.xlu0 %v924
  %v926 = vpop.xlane.xlu0 %925
  %vm927 = vcmp.eq.f32.partialorder %v924, %v926
  %v928 = vsel %vm927, %v923, inf
  %929 = vmin.xlane.f32.xlu0 %v928
  %v930 = vpop.xlane.xlu0 %929
  %v931 = vcvt.f32.s32 %v930
  %v932 = vcvt.f32.s32 %v926
  %v933 = vshll.u32 %v932, 16
  %v934 = vadd.s32 %v933, %v931
  %v935 = vsub.f32 %v906, %v915
  %v936 = vmul.f32 %v935, 1.442695
  %v937 = vpow.pop %v936
  %939 = vrot.lane.b32.xlu0 %v937, 42
  %v940 = vpop.permute.xlu0 %939
  %v942 = vsel %vm490, %v940, 0.0
  %943 = vadd.xlane.f32.xlu0 %v942
  %v944 = vpop.xlane.xlu0 %943
  %v945 = vlog2.pop %v944
  %v946 = vmul.f32 %v945, 0.6931472
  %v947 = vadd.f32 %v915, %v946
  %v948 = vadd.f32 %v183, 0.0
  %v949 = vadd.f32 %v149, 0.0
  %vm950 = vcmask 1024
  %951 = vst.msk [vmem:[%s6] sm:$0x3] %vm950, %v170
  %v952 = vadd.f32 %v948, %v242
  %v953 = vadd.f32 %v949, %v210
  %vm954 = vcmask 9224
  %955 = vst.msk [vmem:[%s6] sm:$0x3] %vm954, %v229
  %v956 = vadd.f32 %v952, %v301
  %v957 = vadd.f32 %v953, %v269
  %vm958 = vcmask 17424
  %959 = vst.msk [vmem:[%s6] sm:$0x3] %vm958, %v288
  %v960 = vadd.f32 %v956, %v115
  %v961 = vadd.f32 %v957, %v115
  %v962 = vadd.f32 %v538, 0.0
  %v963 = vadd.f32 %v506, 0.0
  %vm964 = vcmask 25624
  %965 = vst.msk [vmem:[%s6] sm:$0x3] %vm964, %v525
  %v966 = vadd.f32 %v962, %v597
  %v967 = vadd.f32 %v963, %v565
  %vm968 = vcmask 33824
  %969 = vst.msk [vmem:[%s6] sm:$0x3] %vm968, %v584
  %v970 = vadd.f32 %v966, %v115
  %v971 = vadd.f32 %v967, %v115
  %v972 = vadd.f32 %v656, 0.0
  %v973 = vadd.f32 %v624, 0.0
  %vm974 = vcmask 50224
  %975 = vst.msk [vmem:[%s6] sm:$0x3] %vm974, %v643
  %v976 = vadd.f32 %v972, %v715
  %v977 = vadd.f32 %v973, %v683
  %vm978 = vcmask 58424
  %979 = vst.msk [vmem:[%s6] sm:$0x3] %vm978, %v702
  %v980 = vadd.f32 %v976, %v360
  %v981 = vadd.f32 %v977, %v328
  %vm982 = vcmask 66624
  %983 = vst.msk [vmem:[%s6] sm:$0x3] %vm982, %v347
  %v984 = vadd.f32 %v980, %v115
  %v985 = vadd.f32 %v981, %v115
  %v986 = vadd.f32 %v419, 0.0
  %v987 = vadd.f32 %v387, 0.0
  %vm988 = vcmask 74824
  %989 = vst.msk [vmem:[%s6] sm:$0x3] %vm988, %v406
  %v990 = vadd.f32 %v986, %v115
  %v991 = vadd.f32 %v987, %v115
  %v992 = vadd.f32 %v478, 0.0
  %v993 = vadd.f32 %v446, 0.0
  %vm994 = vcmask 99424
  %995 = vst.msk [vmem:[%s6] sm:$0x3] %vm994, %v465
  %v996 = vadd.f32 %v992, %v773
  %v997 = vadd.f32 %v993, %v741
  %vm998 = vcmask 107624
  %999 = vst.msk [vmem:[%s6] sm:$0x3] %vm998, %v760
  %v1000 = vadd.f32 %v996, %v115
  %v1001 = vadd.f32 %v997, %v115
  %v1002 = vadd.f32 %v831, 0.0
  %v1003 = vadd.f32 %v799, 0.0
  %vm1004 = vcmask 124024
  %1005 = vst.msk [vmem:[%s6] sm:$0x3] %vm1004, %v818
  %v1006 = vadd.f32 %v1002, %v889
  %v1007 = vadd.f32 %v1003, %v857
  %vm1008 = vcmask 132224
  %1009 = vst.msk [vmem:[%s6] sm:$0x3] %vm1008, %v876
  %v1010 = vadd.f32 %v1006, %v947
  %v1011 = vadd.f32 %v1007, %v915
  %vm1012 = vcmask 140424
  %1013 = vst.msk [vmem:[%s6] sm:$0x3] %vm1012, %v934
  %v1014 = vadd.f32 %v1010, %v115
  %v1015 = vadd.f32 %v1011, %v115
  %1017 = vrot.lane.b32.xlu0 %v970, 127
  %v1018 = vpop.permute.xlu0 %1017
  %v1020 = vmax.f32 %v960, %v1018
  %1022 = vrot.lane.b32.xlu0 %v984, 126
  %v1023 = vpop.permute.xlu0 %1022
  %v1025 = vmax.f32 %v1020, %v1023
  %1027 = vrot.lane.b32.xlu0 %v990, 125
  %v1028 = vpop.permute.xlu0 %1027
  %v1030 = vmax.f32 %v1025, %v1028
  %1032 = vrot.lane.b32.xlu0 %v1000, 124
  %v1033 = vpop.permute.xlu0 %1032
  %v1035 = vmax.f32 %v1030, %v1033
  %1037 = vrot.lane.b32.xlu0 %v1014, 123
  %v1038 = vpop.permute.xlu0 %1037
  %v1040 = vmax.f32 %v1035, %v1038
  %v1041 = vsub.f32 %v960, %v1040
  %v1042 = vmul.f32 %v1041, 1.442695
  %v1043 = vpow.pop %v1042
  %v1044 = vadd.f32 %v1043, 0.0
  %1046 = vrot.lane.b32.xlu0 %v1040, 1
  %v1047 = vpop.permute.xlu0 %1046
  %v1049 = vsub.f32 %v970, %v1047
  %v1050 = vmul.f32 %v1049, 1.442695
  %v1051 = vpow.pop %v1050
  %1053 = vrot.lane.b32.xlu0 %v1051, 127
  %v1054 = vpop.permute.xlu0 %1053
  %v1056 = vadd.f32 %v1044, %v1054
  %1057 = vrot.lane.b32.xlu0 %v1040, 2
  %v1058 = vpop.permute.xlu0 %1057
  %v1060 = vsub.f32 %v984, %v1058
  %v1061 = vmul.f32 %v1060, 1.442695
  %v1062 = vpow.pop %v1061
  %1064 = vrot.lane.b32.xlu0 %v1062, 126
  %v1065 = vpop.permute.xlu0 %1064
  %v1067 = vadd.f32 %v1056, %v1065
  %1068 = vrot.lane.b32.xlu0 %v1040, 3
  %v1069 = vpop.permute.xlu0 %1068
  %v1071 = vsub.f32 %v990, %v1069
  %v1072 = vmul.f32 %v1071, 1.442695
  %v1073 = vpow.pop %v1072
  %1075 = vrot.lane.b32.xlu0 %v1073, 125
  %v1076 = vpop.permute.xlu0 %1075
  %v1078 = vadd.f32 %v1067, %v1076
  %1079 = vrot.lane.b32.xlu0 %v1040, 4
  %v1080 = vpop.permute.xlu0 %1079
  %v1082 = vsub.f32 %v1000, %v1080
  %v1083 = vmul.f32 %v1082, 1.442695
  %v1084 = vpow.pop %v1083
  %1086 = vrot.lane.b32.xlu0 %v1084, 124
  %v1087 = vpop.permute.xlu0 %1086
  %v1089 = vadd.f32 %v1078, %v1087
  %1090 = vrot.lane.b32.xlu0 %v1040, 5
  %v1091 = vpop.permute.xlu0 %1090
  %v1093 = vsub.f32 %v1014, %v1091
  %v1094 = vmul.f32 %v1093, 1.442695
  %v1095 = vpow.pop %v1094
  %1097 = vrot.lane.b32.xlu0 %v1095, 123
  %v1098 = vpop.permute.xlu0 %1097
  %v1100 = vadd.f32 %v1089, %v1098
  %v1101 = vlog2.pop %v1100
  %v1102 = vmul.f32 %v1101, 0.6931472
  %v1103 = vadd.f32 %v1040, %v1102
  %1105 = vrot.lane.b32.xlu0 %v1103, 4
  %v1106 = vpop.permute.xlu0 %1105
  %1108 = vst.msk [vmem:[%s5 + $0x2] sm:$0x3] %vm968, %v1106
  %1110 = vrot.lane.b32.xlu0 %v961, 126
  %v1111 = vpop.permute.xlu0 %1110
  %vm1113 = vcmask 1034224
  %1114 = vst.msk [vmem:[%s5] sm:$0x3] %vm1113, %v1111
  %1116 = vrot.lane.b32.xlu0 %v971, 126
  %v1117 = vpop.permute.xlu0 %1116
  %vm1119 = vcmask 1042424
  %1120 = vst.msk [vmem:[%s5] sm:$0x3] %vm1119, %v1117
  %1122 = vrot.lane.b32.xlu0 %v985, 126
  %v1123 = vpop.permute.xlu0 %1122
  %1125 = vst.msk [vmem:[%s5 + $0x2] sm:$0x3] %vm950, %v1123
  %1127 = vrot.lane.b32.xlu0 %v991, 126
  %v1128 = vpop.permute.xlu0 %1127
  %1130 = vst.msk [vmem:[%s5 + $0x2] sm:$0x3] %vm954, %v1128
  %1132 = vrot.lane.b32.xlu0 %v1001, 126
  %v1133 = vpop.permute.xlu0 %1132
  %1135 = vst.msk [vmem:[%s5 + $0x2] sm:$0x3] %vm958, %v1133
  %1137 = vrot.lane.b32.xlu0 %v1015, 126
  %v1138 = vpop.permute.xlu0 %1137
  %1140 = vst.msk [vmem:[%s5 + $0x2] sm:$0x3] %vm964, %v1138
  // Predicated region
  $region22: #{forward.1} parent=0 // pred_check
    _
  $region23: #{forward.1} parent=0 // pred_check_branch
    %1142 = sbr.rel (0) target = $region25
  $region24: #{forward.1} parent=0 // pred_region
    _
  $region25: #{forward.1} parent=0 // pred_fallthru
    _
  // Predicated region
  $region26: #{forward.1} parent=0 // pred_check
    _
  $region27: #{forward.1} parent=0 // pred_check_branch
    %1144 = sbr.rel (0) target = $region29
  $region28: #{forward.1} parent=0 // pred_region
    _
  $region29: #{forward.1} parent=0 // pred_fallthru
    _
  // Predicated region
  $region30: #{forward.1} parent=0 // pred_check
    _
  $region31: #{forward.1} parent=0 // pred_check_branch
    %1146 = sbr.rel (0) target = $region33
  $region32: #{forward.1} parent=0 // pred_region
    _
  $region33: #{forward.1} parent=0 // pred_fallthru
    _
  // Predicated region
  $region34: #{forward.1} parent=0 // pred_check
    _
  $region35: #{forward.1} parent=0 // pred_check_branch
    %1148 = sbr.rel (0) target = $region37
  $region36: #{forward.1} parent=0 // pred_region
    _
  $region37: #{forward.1} parent=0 // pred_fallthru
    _

</llo_original>
